<compile_context>
chip_gen: v6e
topology: v6e:2x2x1
jax: 0.10.0
libtpu: 0.0.40
codegen_flags: <defaults>
</compile_context>

<pallas_src>
import functools

import jax
import jax.numpy as jnp
from jax import lax
from jax.experimental import pallas as pl
from jax.experimental.pallas import tpu as pltpu


# ----------------------------- Pallas kernel --------------------------------


def _fused_unet_inner_kernel(u_ref, wd_ref, wu_ref, z_ref, stats_ref,
                             *, ho, wo, cdtype):
    """Fused LeakyReLU -> down-conv -> ReLU -> up-ConvT (+ BN partial stats).

    u_ref     : (1, 4*cin, Ho+1, Wo+1)  space-to-depth, channel-first, padded input
    wd_ref    : (ni, 16*cin)            folded down-conv weight (all 2x2 taps in K)
    wu_ref    : (4*nf, 9*ni)            folded ConvT weight (all phases x taps in K)
    z_ref     : (1, 4*nf, Ho*Wo)        up-conv output, phase-major channels, spatial-last
    stats_ref : (1, 4*nf, 2)            per-image (phase,channel) sum / sum-of-squares
    """
    ni = wd_ref.shape[0]
    c4 = u_ref.shape[1]

    # LeakyReLU(0.2) fused onto the input (padding zeros are a fixed point).
    u = u_ref[0].astype(jnp.float32)
    u = jnp.where(u > 0, u, 0.2 * u).astype(cdtype)

    # Implicit im2col: the four 2x2 taps are concatenated along the contraction
    # axis -> the entire down conv is a single MXU matmul.
    a_dn = jnp.concatenate(
        [u[:, ti:ti + ho, tj:tj + wo].reshape(c4, ho * wo)
         for ti in range(2) for tj in range(2)], axis=0)          # (16cin, Ho*Wo)
    y = jnp.dot(wd_ref[...], a_dn, preferred_element_type=jnp.float32)   # (ni, Ho*Wo)

    # ReLU fused; y and its 1-pixel zero halo stay entirely in VMEM.
    y = jnp.maximum(y, 0.0).astype(cdtype).reshape(ni, ho, wo)
    zr = jnp.zeros((ni, 1, wo), cdtype)
    zc = jnp.zeros((ni, ho + 2, 1), cdtype)
    y_pad = jnp.concatenate([zc, jnp.concatenate([zr, y, zr], axis=1), zc], axis=2)

    # Sub-pixel ConvTranspose: the 4 output phases share the 9 shifted windows of
    # y_pad; folding all (phase, tap) pairs into one (4nf, 9ni) weight makes the
    # whole up conv a single matmul with a lane-dense (spatial-last) output.
    a_up = jnp.concatenate(
        [y_pad[:, dy:dy + ho, dx:dx + wo].reshape(ni, ho * wo)
         for dy in range(3) for dx in range(3)], axis=0)          # (9ni, Ho*Wo)
    z = jnp.dot(wu_ref[...], a_up, preferred_element_type=jnp.float32)   # (4nf, Ho*Wo)

    z_ref[0] = z.astype(z_ref.dtype)

    # Fused BatchNorm partial statistics: two f32 lane reductions per grid step,
    # computed from the f32 accumulator before the bf16 cast of z.
    s1 = jnp.sum(z, axis=1, keepdims=True)
    s2 = jnp.sum(z * z, axis=1, keepdims=True)
    stats_ref[0] = jnp.concatenate([s1, s2], axis=1)


# ------------------------------- JAX glue -----------------------------------


def unet_block_innermost(x_nchw, params, compute_dtype=jnp.bfloat16):
    """Innermost UnetBlock forward. Pass compute_dtype=jnp.float32 for tight validation."""
    N, cin, H, W = x_nchw.shape
    assert H % 2 == 0 and W % 2 == 0
    Ho, Wo = H // 2, W // 2
    w_down = params["w_down"]                     # Conv2d weight  (ni, cin, 4, 4)
    w_up = params["w_up"]                         # ConvT  weight  (ni, nf, 4, 4)
    ni, nf = w_down.shape[0], w_up.shape[1]

    x_f = x_nchw.astype(jnp.float32)

    # --- down input: k4 s2 p1 conv == k2 s1 conv on space-to-depth(pad(x,1)),
    #     kept channel-first so spatial stays on the lane axis inside the kernel.
    xp = jnp.pad(x_f, ((0, 0), (0, 0), (1, 1), (1, 1)))
    u = xp.reshape(N, cin, Ho + 1, 2, Wo + 1, 2)
    u = jnp.transpose(u, (0, 3, 5, 1, 2, 4)).reshape(N, 4 * cin, Ho + 1, Wo + 1)
    u = u.astype(compute_dtype)

    # --- folded down-conv weight: contraction index order = [ti, tj, si, sj, ci]
    w6 = w_down.reshape(ni, cin, 2, 2, 2, 2)                 # [co, ci, ti, si, tj, sj]
    wd_f = jnp.transpose(w6, (0, 2, 4, 3, 5, 1)).reshape(ni, 16 * cin)
    wd_f = wd_f.astype(compute_dtype)

    # --- folded ConvT weight: rows = (phase, co), cols = (window dy,dx, ci).
    #     Phase (py,px): output pixel (2r+py, 2b+px) uses y_pad windows
    #     (dy,dx) in {py,py+1}x{px,px+1} with kernel indices kidx[parity][tap].
    kidx = ((3, 1), (2, 0))
    wu_big = jnp.zeros((4 * nf, 9 * ni), jnp.float32)
    for py in range(2):
        for px in range(2):
            p = py * 2 + px
            for ti in range(2):
                for tj in range(2):
                    dy, dx = py + ti, px + tj
                    kh, kw = kidx[py][ti], kidx[px][tj]
                    blk = jnp.transpose(w_up[:, :, kh, kw])   # (nf, ni) = [co, ci]
                    wu_big = wu_big.at[p * nf:(p + 1) * nf,
                                       (dy * 3 + dx) * ni:(dy * 3 + dx + 1) * ni].set(blk)
    wu_big = wu_big.astype(compute_dtype)

    kernel = functools.partial(_fused_unet_inner_kernel, ho=Ho, wo=Wo,
                               cdtype=compute_dtype)

    z_all, stats = pl.pallas_call(
        kernel,
        grid=(N,),
        in_specs=[
            pl.BlockSpec((1, 4 * cin, Ho + 1, Wo + 1), lambda n: (n, 0, 0, 0)),
            pl.BlockSpec((ni, 16 * cin), lambda n: (0, 0)),      # resident weights
            pl.BlockSpec((4 * nf, 9 * ni), lambda n: (0, 0)),
        ],
        out_specs=[
            pl.BlockSpec((1, 4 * nf, Ho * Wo), lambda n: (n, 0, 0)),
            pl.BlockSpec((1, 4 * nf, 2), lambda n: (n, 0, 0)),
        ],
        out_shape=[
            jax.ShapeDtypeStruct((N, 4 * nf, Ho * Wo), compute_dtype),  # bf16 writeback
            jax.ShapeDtypeStruct((N, 4 * nf, 2), jnp.float32),
        ],
        compiler_params=pltpu.CompilerParams(dimension_semantics=("parallel",)),
    )(u, wd_f, wu_big)

    # --- BatchNorm2d(nf), training-mode batch stats; affine folded into scale/shift.
    cnt = float(N * H * W)
    s1 = jnp.sum(stats[:, :, 0].reshape(N, 4, nf), axis=(0, 1))
    s2 = jnp.sum(stats[:, :, 1].reshape(N, 4, nf), axis=(0, 1))
    mean = s1 / cnt
    var = jnp.maximum(s2 / cnt - mean * mean, 0.0)           # biased (torch), clamped >= 0
    scale = params["bn_gamma"] * lax.rsqrt(var + 1e-5)
    shift = params["bn_beta"] - mean * scale

    # --- epilogue: BN affine + sub-pixel phase interleave + NCHW + skip concat.
    # TODO(synk): could be a small Pallas epilogue kernel with strided stores; left to
    #   XLA fusion here.
    z = z_all.astype(jnp.float32).reshape(N, 2, 2, nf, Ho, Wo)
    z = (z * scale[None, None, None, :, None, None]
         + shift[None, None, None, :, None, None])
    z = jnp.transpose(z, (0, 3, 4, 1, 5, 2)).reshape(N, nf, H, W)
    return jnp.concatenate([x_f, z], axis=1)                 # (N, 2*nf, H, W)


# ---------------- pure-jnp f32 reference (sanity check only) ----------------


def _im2col(x_nhwc, k, s, p):
    N, H, W, C = x_nhwc.shape
    xp = jnp.pad(x_nhwc, ((0, 0), (p, p), (p, p), (0, 0)))
    Ho = (H + 2 * p - k) // s + 1
    Wo = (W + 2 * p - k) // s + 1
    cols = []
    for di in range(k):
        for dj in range(k):
            cols.append(xp[:, di:di + s * Ho:s, dj:dj + s * Wo:s, :])
    patches = jnp.stack(cols, axis=3)
    return patches.reshape(N * Ho * Wo, k * k * C), (N, Ho, Wo)


def _reference(x_nchw, params):
    x = jnp.transpose(x_nchw, (0, 2, 3, 1)).astype(jnp.float32)
    N, H, W, cin = x.shape
    a_down, (_, Ho, Wo) = _im2col(jnp.where(x > 0, x, 0.2 * x), k=4, s=2, p=1)
    w_down = params["w_down"]
    ni = w_down.shape[0]
    y = (a_down @ jnp.transpose(w_down, (2, 3, 1, 0)).reshape(16 * cin, ni)
         ).reshape(N, Ho, Wo, ni)
    up = jnp.zeros((N, (Ho - 1) * 2 + 1, (Wo - 1) * 2 + 1, ni), jnp.float32)
    up = up.at[:, ::2, ::2, :].set(jnp.maximum(y, 0.0))
    a_up, _ = _im2col(up, k=4, s=1, p=2)
    w_up = params["w_up"]
    nf = w_up.shape[1]
    w_up_conv = jnp.transpose(w_up, (1, 0, 2, 3))[:, :, ::-1, ::-1]
    z = a_up @ jnp.transpose(w_up_conv, (2, 3, 1, 0)).reshape(16 * ni, nf)
    mean = jnp.mean(z, axis=0, keepdims=True)
    var = jnp.mean((z - mean) ** 2, axis=0, keepdims=True)
    z = (z - mean) * lax.rsqrt(var + 1e-5) * params["bn_gamma"] + params["bn_beta"]
    out = jnp.concatenate([x, z.reshape(N, H, W, nf)], axis=-1)
    return jnp.transpose(out, (0, 3, 1, 2))


if __name__ == "__main__":
    nf, ni = 4, 8                     # UnetBlock(nf=4, ni=8, innermost=True); input_c = nf
    key = jax.random.PRNGKey(0)
    k_wd, k_wu, k_x = jax.random.split(key, 3)
    params = {
        "w_down": jax.random.normal(k_wd, (ni, nf, 4, 4), jnp.float32) * 0.1,
        "w_up": jax.random.normal(k_wu, (ni, nf, 4, 4), jnp.float32) * 0.1,
        "bn_gamma": jnp.ones((nf,), jnp.float32),
        "bn_beta": jnp.zeros((nf,), jnp.float32),
    }
    x = jax.random.normal(k_x, (2, nf, 16, 16), jnp.float32)                     # NCHW

    out = jax.jit(lambda v: unet_block_innermost(v, params))(x)
    out = jax.block_until_ready(out)
    assert out.shape == (2, 2 * nf, 16, 16), out.shape

    ref = _reference(x, params)
    err = float(jnp.max(jnp.abs(out - ref)))
    # bf16 matmul operands and bf16 z writeback (f32 accumulation) vs. f32 reference,
    # amplified by the BN normalization -> allow a modest numeric slack.
    assert err < 2e-1, err
    # skip-connection channels must be an exact copy of the input
    assert bool(jnp.array_equal(out[:, :nf], x))

    print("KERNEL_OK")
</pallas_src>

<mosaic_0001>
module attributes {stable_mosaic.version = 11 : i64} {
  func.func @_fused_unet_inner_kernel(%arg0: i32, %arg1: memref<1x16x9x9xbf16, #tpu.memory_space<vmem>>, %arg2: memref<8x64xbf16, #tpu.memory_space<vmem>>, %arg3: memref<16x72xbf16, #tpu.memory_space<vmem>>, %arg4: memref<1x16x64xbf16, #tpu.memory_space<vmem>>, %arg5: memref<1x16x2xf32, #tpu.memory_space<vmem>>) attributes {dimension_semantics = [#tpu.dimension_semantics<parallel>], iteration_bounds = array<i64: 2>, scalar_prefetch = 0 : i64, scratch_operands = 0 : i64, tpu.core_type = #tpu.core_type<tc>, window_params = [{transform_indices = @transform_0, window_bounds = array<i64: 1, 16, 9, 9>}, {pipeline_mode = #tpu.pipeline_mode<synchronous>, transform_indices = @transform_1, window_bounds = array<i64: 8, 64>}, {pipeline_mode = #tpu.pipeline_mode<synchronous>, transform_indices = @transform_2, window_bounds = array<i64: 16, 72>}, {transform_indices = @transform_3, window_bounds = array<i64: 1, 16, 64>}, {transform_indices = @transform_4, window_bounds = array<i64: 1, 16, 2>}]} {
    %c0 = arith.constant 0 : index
    %c0_0 = arith.constant 0 : index
    %c0_1 = arith.constant 0 : index
    %c0_2 = arith.constant 0 : index
    %0 = vector.load %arg1[%c0, %c0_0, %c0_1, %c0_2] : memref<1x16x9x9xbf16, #tpu.memory_space<vmem>>, vector<1x16x9x9xbf16>
    %1 = vector.shape_cast %0 : vector<1x16x9x9xbf16> to vector<16x9x9xbf16>
    %2 = arith.extf %1 : vector<16x9x9xbf16> to vector<16x9x9xf32>
    %cst = arith.constant 0.000000e+00 : f32
    %3 = vector.broadcast %cst : f32 to vector<16x9x9xf32>
    %4 = arith.cmpf ogt, %2, %3 : vector<16x9x9xf32>
    %cst_3 = arith.constant 2.000000e-01 : f32
    %5 = vector.broadcast %cst_3 : f32 to vector<16x9x9xf32>
    %6 = arith.mulf %5, %2 : vector<16x9x9xf32>
    %7 = arith.select %4, %2, %6 : vector<16x9x9xi1>, vector<16x9x9xf32>
    %8 = arith.truncf %7 : vector<16x9x9xf32> to vector<16x9x9xbf16>
    %9 = vector.extract_strided_slice %8 {offsets = [0, 0, 0], sizes = [16, 8, 8], strides = [1, 1, 1]} : vector<16x9x9xbf16> to vector<16x8x8xbf16>
    %10 = vector.shape_cast %9 : vector<16x8x8xbf16> to vector<16x64xbf16>
    %11 = vector.extract_strided_slice %8 {offsets = [0, 0, 1], sizes = [16, 8, 8], strides = [1, 1, 1]} : vector<16x9x9xbf16> to vector<16x8x8xbf16>
    %12 = vector.shape_cast %11 : vector<16x8x8xbf16> to vector<16x64xbf16>
    %13 = vector.extract_strided_slice %8 {offsets = [0, 1, 0], sizes = [16, 8, 8], strides = [1, 1, 1]} : vector<16x9x9xbf16> to vector<16x8x8xbf16>
    %14 = vector.shape_cast %13 : vector<16x8x8xbf16> to vector<16x64xbf16>
    %15 = vector.extract_strided_slice %8 {offsets = [0, 1, 1], sizes = [16, 8, 8], strides = [1, 1, 1]} : vector<16x9x9xbf16> to vector<16x8x8xbf16>
    %16 = vector.shape_cast %15 : vector<16x8x8xbf16> to vector<16x64xbf16>
    %17 = tpu.concatenate %10, %12, %14, %16 in 0 : vector<16x64xbf16>, vector<16x64xbf16>, vector<16x64xbf16>, vector<16x64xbf16> -> vector<64x64xbf16>
    %c0_4 = arith.constant 0 : index
    %c0_5 = arith.constant 0 : index
    %18 = vector.load %arg2[%c0_4, %c0_5] : memref<8x64xbf16, #tpu.memory_space<vmem>>, vector<8x64xbf16>
    %cst_6 = arith.constant dense<0.000000e+00> : vector<8x64xf32>
    %19 = tpu.matmul %18, %17, %cst_6 {dimension_numbers = #tpu.dot_dimension_numbers<[1], [0], [0], [1], [0, 0, 1, 1], [], []>} : vector<8x64xbf16>, vector<64x64xbf16>, vector<8x64xf32> -> vector<8x64xf32>
    %cst_7 = arith.constant 0.000000e+00 : f32
    %20 = vector.broadcast %cst_7 : f32 to vector<8x64xf32>
    %21 = arith.maximumf %19, %20 : vector<8x64xf32>
    %22 = arith.truncf %21 : vector<8x64xf32> to vector<8x64xbf16>
    %23 = vector.shape_cast %22 : vector<8x64xbf16> to vector<8x8x8xbf16>
    %cst_8 = arith.constant 0.000000e+00 : bf16
    %24 = vector.broadcast %cst_8 : bf16 to vector<8x1x8xbf16>
    %cst_9 = arith.constant 0.000000e+00 : bf16
    %25 = vector.broadcast %cst_9 : bf16 to vector<8x10x1xbf16>
    %26 = tpu.concatenate %24, %23, %24 in 1 : vector<8x1x8xbf16>, vector<8x8x8xbf16>, vector<8x1x8xbf16> -> vector<8x10x8xbf16>
    %27 = tpu.concatenate %25, %26, %25 in 2 : vector<8x10x1xbf16>, vector<8x10x8xbf16>, vector<8x10x1xbf16> -> vector<8x10x10xbf16>
    %28 = vector.extract_strided_slice %27 {offsets = [0, 0, 0], sizes = [8, 8, 8], strides = [1, 1, 1]} : vector<8x10x10xbf16> to vector<8x8x8xbf16>
    %29 = vector.shape_cast %28 : vector<8x8x8xbf16> to vector<8x64xbf16>
    %30 = vector.extract_strided_slice %27 {offsets = [0, 0, 1], sizes = [8, 8, 8], strides = [1, 1, 1]} : vector<8x10x10xbf16> to vector<8x8x8xbf16>
    %31 = vector.shape_cast %30 : vector<8x8x8xbf16> to vector<8x64xbf16>
    %32 = vector.extract_strided_slice %27 {offsets = [0, 0, 2], sizes = [8, 8, 8], strides = [1, 1, 1]} : vector<8x10x10xbf16> to vector<8x8x8xbf16>
    %33 = vector.shape_cast %32 : vector<8x8x8xbf16> to vector<8x64xbf16>
    %34 = vector.extract_strided_slice %27 {offsets = [0, 1, 0], sizes = [8, 8, 8], strides = [1, 1, 1]} : vector<8x10x10xbf16> to vector<8x8x8xbf16>
    %35 = vector.shape_cast %34 : vector<8x8x8xbf16> to vector<8x64xbf16>
    %36 = vector.extract_strided_slice %27 {offsets = [0, 1, 1], sizes = [8, 8, 8], strides = [1, 1, 1]} : vector<8x10x10xbf16> to vector<8x8x8xbf16>
    %37 = vector.shape_cast %36 : vector<8x8x8xbf16> to vector<8x64xbf16>
    %38 = vector.extract_strided_slice %27 {offsets = [0, 1, 2], sizes = [8, 8, 8], strides = [1, 1, 1]} : vector<8x10x10xbf16> to vector<8x8x8xbf16>
    %39 = vector.shape_cast %38 : vector<8x8x8xbf16> to vector<8x64xbf16>
    %40 = vector.extract_strided_slice %27 {offsets = [0, 2, 0], sizes = [8, 8, 8], strides = [1, 1, 1]} : vector<8x10x10xbf16> to vector<8x8x8xbf16>
    %41 = vector.shape_cast %40 : vector<8x8x8xbf16> to vector<8x64xbf16>
    %42 = vector.extract_strided_slice %27 {offsets = [0, 2, 1], sizes = [8, 8, 8], strides = [1, 1, 1]} : vector<8x10x10xbf16> to vector<8x8x8xbf16>
    %43 = vector.shape_cast %42 : vector<8x8x8xbf16> to vector<8x64xbf16>
    %44 = vector.extract_strided_slice %27 {offsets = [0, 2, 2], sizes = [8, 8, 8], strides = [1, 1, 1]} : vector<8x10x10xbf16> to vector<8x8x8xbf16>
    %45 = vector.shape_cast %44 : vector<8x8x8xbf16> to vector<8x64xbf16>
    %46 = tpu.concatenate %29, %31, %33, %35, %37, %39, %41, %43, %45 in 0 : vector<8x64xbf16>, vector<8x64xbf16>, vector<8x64xbf16>, vector<8x64xbf16>, vector<8x64xbf16>, vector<8x64xbf16>, vector<8x64xbf16>, vector<8x64xbf16>, vector<8x64xbf16> -> vector<72x64xbf16>
    %c0_10 = arith.constant 0 : index
    %c0_11 = arith.constant 0 : index
    %47 = vector.load %arg3[%c0_10, %c0_11] : memref<16x72xbf16, #tpu.memory_space<vmem>>, vector<16x72xbf16>
    %cst_12 = arith.constant dense<0.000000e+00> : vector<16x64xf32>
    %48 = tpu.matmul %47, %46, %cst_12 {dimension_numbers = #tpu.dot_dimension_numbers<[1], [0], [0], [1], [0, 0, 1, 1], [], []>} : vector<16x72xbf16>, vector<72x64xbf16>, vector<16x64xf32> -> vector<16x64xf32>
    %49 = arith.truncf %48 : vector<16x64xf32> to vector<16x64xbf16>
    %c0_13 = arith.constant 0 : index
    %c0_14 = arith.constant 0 : index
    %c0_15 = arith.constant 0 : index
    %50 = vector.load %arg4[%c0_13, %c0_14, %c0_15] : memref<1x16x64xbf16, #tpu.memory_space<vmem>>, vector<1x16x64xbf16>
    %51 = vector.shape_cast %50 : vector<1x16x64xbf16> to vector<16x64xbf16>
    %52 = vector.shape_cast %49 : vector<16x64xbf16> to vector<1x16x64xbf16>
    tpu.vector_store %arg4[%c0_13, %c0_14, %c0_15], %52 {strides = array<i32>} : memref<1x16x64xbf16, #tpu.memory_space<vmem>>, vector<1x16x64xbf16>,
    %cst_16 = arith.constant dense<0.000000e+00> : vector<16xf32>
    %53 = vector.multi_reduction <add>, %48, %cst_16 [1] : vector<16x64xf32> to vector<16xf32>
    %54 = vector.shape_cast %53 : vector<16xf32> to vector<16x1xf32>
    %55 = arith.mulf %48, %48 : vector<16x64xf32>
    %cst_17 = arith.constant dense<0.000000e+00> : vector<16xf32>
    %56 = vector.multi_reduction <add>, %55, %cst_17 [1] : vector<16x64xf32> to vector<16xf32>
    %57 = vector.shape_cast %56 : vector<16xf32> to vector<16x1xf32>
    %58 = tpu.concatenate %54, %57 in 1 : vector<16x1xf32>, vector<16x1xf32> -> vector<16x2xf32>
    %c0_18 = arith.constant 0 : index
    %c0_19 = arith.constant 0 : index
    %c0_20 = arith.constant 0 : index
    %59 = vector.load %arg5[%c0_18, %c0_19, %c0_20] : memref<1x16x2xf32, #tpu.memory_space<vmem>>, vector<1x16x2xf32>
    %60 = vector.shape_cast %59 : vector<1x16x2xf32> to vector<16x2xf32>
    %61 = vector.shape_cast %58 : vector<16x2xf32> to vector<1x16x2xf32>
    tpu.vector_store %arg5[%c0_18, %c0_19, %c0_20], %61 {strides = array<i32>} : memref<1x16x2xf32, #tpu.memory_space<vmem>>, vector<1x16x2xf32>,
    return
  }
  func.func @transform_0(%arg0: i32) -> (i32, i32, i32, i32) {
    %c0_i32 = arith.constant 0 : i32
    %c0_i32_0 = arith.constant 0 : i32
    %c0_i32_1 = arith.constant 0 : i32
    %c0_i32_2 = arith.constant 0 : i32
    return %arg0, %c0_i32, %c0_i32_0, %c0_i32_1 : i32, i32, i32, i32
  }
  func.func @transform_1(%arg0: i32) -> (i32, i32) {
    %c0_i32 = arith.constant 0 : i32
    %c0_i32_0 = arith.constant 0 : i32
    %c0_i32_1 = arith.constant 0 : i32
    return %c0_i32, %c0_i32_0 : i32, i32
  }
  func.func @transform_2(%arg0: i32) -> (i32, i32) {
    %c0_i32 = arith.constant 0 : i32
    %c0_i32_0 = arith.constant 0 : i32
    %c0_i32_1 = arith.constant 0 : i32
    return %c0_i32, %c0_i32_0 : i32, i32
  }
  func.func @transform_3(%arg0: i32) -> (i32, i32, i32) {
    %c0_i32 = arith.constant 0 : i32
    %c0_i32_0 = arith.constant 0 : i32
    %c0_i32_1 = arith.constant 0 : i32
    return %arg0, %c0_i32, %c0_i32_0 : i32, i32, i32
  }
  func.func @transform_4(%arg0: i32) -> (i32, i32, i32) {
    %c0_i32 = arith.constant 0 : i32
    %c0_i32_0 = arith.constant 0 : i32
    %c0_i32_1 = arith.constant 0 : i32
    return %arg0, %c0_i32, %c0_i32_0 : i32, i32, i32
  }
}

</mosaic_0001>

<llo_original>
// kernel: _lambda_.1
$region0: #{_lambda_.1}
  #allocation0 [shape = 'u32[]', space=smem, size = 0x4, offset = 0x4, fixed_abs, tag = 'smem constant byte address 0x4 - core index']
  #allocation1 [shape = 'u32[144,128]{1,0:T(1,128)}', space=vmem, size = 0x12000, scoped, tag = 'internal scratch']
  %s0 = inlined_call_operand.vmem [shape: bf16[2,16,9,9], index: 0, kind: input, shape index: {}]
  %s1 = inlined_call_operand.vmem [shape: bf16[8,64], index: 1, kind: input, shape index: {}]
  %s2 = inlined_call_operand.vmem [shape: bf16[16,72], index: 2, kind: input, shape index: {}]
  %s3 = inlined_call_operand.vmem [shape: bf16[2,16,64], index: 3, kind: output, shape index: {0}]
  %s4 = inlined_call_operand.vmem [shape: f32[2,16,2], index: 4, kind: output, shape index: {1}]
  %5 = xla_tuple %s3, %s4
  %s6 = sld [smem:[#allocation0]]
  $region53: #{_lambda_.1} parent=0
    _
  %s8 = ssub.s32 1, %s6
  %s9 = scalar_select 0, %s8, %s6
  loop: start=0, step=1, limit=4
  $region2: #{_lambda_.1} parent=0 // loop_pre_header
    _
  $region3: #{_lambda_.1} parent=0 // loop_header
    %s11 = sphi 0, %s15
    %p12 = scmp.ge.s32.totalorder %s11, 4
    %s21 = sphi 0, %s23
    %s24 = sphi 0, %s21
    %s25 = sphi 0, %s24
    %s41 = sphi 0, %s25
    %s45 = sphi 0, %s45
    %s47 = sphi 0, %s45
    %s48 = sphi 0, %s47
    %s62 = sphi 0, %s48
    %s66 = sphi 0, %s66
    %s68 = sphi 0, %s66
    %s69 = sphi 0, %s68
    %s83 = sphi 0, %s69
    %s89 = sphi 0, %s91
    %s92 = sphi 0, %s89
    %s93 = sphi 0, %s92
    %s109 = sphi 0, %s93
    %s115 = sphi 0, %s117
    %s118 = sphi 0, %s115
    %s119 = sphi 0, %s118
    %s135 = sphi 0, %s119
  $region4: #{_lambda_.1} parent=0 // loop_header_branch
    %14 = sbr.rel (%p12) target = $region8
  $region5: #{_lambda_.1} parent=0 // loop_body
    %s16 = ssub.s32 %s11, 1
    %s17 = ssub.s32 %s11, 2
    %s18 = sadd.s32 %s11, 1
    %s19 = ssub.s32 %s11, %s18
    %p20 = scmp.eq.s32.totalorder %s19, 0
    %s22 = sadd.s32 %s21, 1
    %s23 = scalar_select %p20, %s21, %s22
    %p26 = pneg %p20
    %p27 = scmp.eq.s32.totalorder %s11, 1
    %p28 = por %p26, %p27
    %p29 = scmp.ne.s32.totalorder %s21, %s24
    %p30 = scmp.eq.s32.totalorder %s11, 0
    %p31 = por %p29, %p30
    %p32 = scmp.ne.s32.totalorder %s21, %s24
    %p33 = scmp.eq.s32.totalorder %s16, 1
    %p34 = por %p32, %p33
    %p35 = scmp.ne.s32.totalorder %s24, %s25
    %p36 = scmp.eq.s32.totalorder %s16, 0
    %p37 = por %p35, %p36
    %p38 = scmp.ne.s32.totalorder %s24, %s25
    %p39 = scmp.eq.s32.totalorder %s17, 1
    %p40 = por %p38, %p39
    %p42 = scmp.ne.s32.totalorder %s25, %s41
    %p43 = scmp.eq.s32.totalorder %s17, 0
    %p44 = por %p42, %p43
    %s46 = sadd.s32 %s45, 1
    %p49 = scmp.eq.s32.totalorder %s11, 1
    %p50 = scmp.ne.s32.totalorder %s45, %s47
    %p51 = scmp.eq.s32.totalorder %s11, 0
    %p52 = por %p50, %p51
    %p53 = scmp.ne.s32.totalorder %s45, %s47
    %p54 = scmp.eq.s32.totalorder %s16, 1
    %p55 = por %p53, %p54
    %p56 = scmp.ne.s32.totalorder %s47, %s48
    %p57 = scmp.eq.s32.totalorder %s16, 0
    %p58 = por %p56, %p57
    %p59 = scmp.ne.s32.totalorder %s47, %s48
    %p60 = scmp.eq.s32.totalorder %s17, 1
    %p61 = por %p59, %p60
    %p63 = scmp.ne.s32.totalorder %s48, %s62
    %p64 = scmp.eq.s32.totalorder %s17, 0
    %p65 = por %p63, %p64
    %s67 = sadd.s32 %s66, 1
    %p70 = scmp.eq.s32.totalorder %s11, 1
    %p71 = scmp.ne.s32.totalorder %s66, %s68
    %p72 = scmp.eq.s32.totalorder %s11, 0
    %p73 = por %p71, %p72
    %p74 = scmp.ne.s32.totalorder %s66, %s68
    %p75 = scmp.eq.s32.totalorder %s16, 1
    %p76 = por %p74, %p75
    %p77 = scmp.ne.s32.totalorder %s68, %s69
    %p78 = scmp.eq.s32.totalorder %s16, 0
    %p79 = por %p77, %p78
    %p80 = scmp.ne.s32.totalorder %s68, %s69
    %p81 = scmp.eq.s32.totalorder %s17, 1
    %p82 = por %p80, %p81
    %p84 = scmp.ne.s32.totalorder %s69, %s83
    %p85 = scmp.eq.s32.totalorder %s17, 0
    %p86 = por %p84, %p85
    %s87 = ssub.s32 %s11, %s18
    %p88 = scmp.eq.s32.totalorder %s87, 0
    %s90 = sadd.s32 %s89, 1
    %s91 = scalar_select %p88, %s89, %s90
    %p94 = pneg %p88
    %p95 = scmp.eq.s32.totalorder %s11, 1
    %p96 = por %p94, %p95
    %p97 = scmp.ne.s32.totalorder %s89, %s92
    %p98 = scmp.eq.s32.totalorder %s11, 0
    %p99 = por %p97, %p98
    %p100 = scmp.ne.s32.totalorder %s89, %s92
    %p101 = scmp.eq.s32.totalorder %s16, 1
    %p102 = por %p100, %p101
    %p103 = scmp.ne.s32.totalorder %s92, %s93
    %p104 = scmp.eq.s32.totalorder %s16, 0
    %p105 = por %p103, %p104
    %p106 = scmp.ne.s32.totalorder %s92, %s93
    %p107 = scmp.eq.s32.totalorder %s17, 1
    %p108 = por %p106, %p107
    %p110 = scmp.ne.s32.totalorder %s93, %s109
    %p111 = scmp.eq.s32.totalorder %s17, 0
    %p112 = por %p110, %p111
    %s113 = ssub.s32 %s11, %s18
    %p114 = scmp.eq.s32.totalorder %s113, 0
    %s116 = sadd.s32 %s115, 1
    %s117 = scalar_select %p114, %s115, %s116
    %p120 = pneg %p114
    %p121 = scmp.eq.s32.totalorder %s11, 1
    %p122 = por %p120, %p121
    %p123 = scmp.ne.s32.totalorder %s115, %s118
    %p124 = scmp.eq.s32.totalorder %s11, 0
    %p125 = por %p123, %p124
    %p126 = scmp.ne.s32.totalorder %s115, %s118
    %p127 = scmp.eq.s32.totalorder %s16, 1
    %p128 = por %p126, %p127
    %p129 = scmp.ne.s32.totalorder %s118, %s119
    %p130 = scmp.eq.s32.totalorder %s16, 0
    %p131 = por %p129, %p130
    %p132 = scmp.ne.s32.totalorder %s118, %s119
    %p133 = scmp.eq.s32.totalorder %s17, 1
    %p134 = por %p132, %p133
    %p136 = scmp.ne.s32.totalorder %s119, %s135
    %p137 = scmp.eq.s32.totalorder %s17, 0
    %p138 = por %p136, %p137
    %p139 = scmp.le.s32.totalorder 1, %s11
    %p140 = scmp.lt.s32.totalorder %s11, 3
    %p141 = pnand %p139, %p140
    %p142 = pneg %p141
    // Predicated region
    $region9: #{_lambda_.1} parent=5 // pred_check
      _
    $region10: #{_lambda_.1} parent=5 // pred_check_branch
      %144 = sbr.rel (%p141) target = $region12
    $region11: #{_lambda_.1} parent=5 // pred_region
      %s145 = ssub.s32 %s11, 1
      // Predicated region
      $region13: #{_lambda_.1} parent=11 // pred_check
        %p146 = pneg %p58
      $region14: #{_lambda_.1} parent=11 // pred_check_branch
        %148 = sbr.rel (%p146) target = $region16
      $region15: #{_lambda_.1} parent=11 // pred_region
        _
      $region16: #{_lambda_.1} parent=11 // pred_fallthru
        _
      // Predicated region
      $region17: #{_lambda_.1} parent=11 // pred_check
        %p149 = pneg %p79
      $region18: #{_lambda_.1} parent=11 // pred_check_branch
        %151 = sbr.rel (%p149) target = $region20
      $region19: #{_lambda_.1} parent=11 // pred_region
        _
      $region20: #{_lambda_.1} parent=11 // pred_fallthru
        _
    $region12: #{_lambda_.1} parent=5 // pred_fallthru
      _
    %p152 = scmp.lt.s32.totalorder %s11, 2
    // Predicated region
    $region21: #{_lambda_.1} parent=5 // pred_check
      %p153 = pneg %p152
    $region22: #{_lambda_.1} parent=5 // pred_check_branch
      %155 = sbr.rel (%p153) target = $region24
    $region23: #{_lambda_.1} parent=5 // pred_region
      // Predicated region
      $region25: #{_lambda_.1} parent=23 // pred_check
        %p156 = pneg %p31
      $region26: #{_lambda_.1} parent=23 // pred_check_branch
        %158 = sbr.rel (%p156) target = $region28
      $region27: #{_lambda_.1} parent=23 // pred_region
        %p159 = scmp.lt.s32.totalorder %s11, 1
        %s160 = scalar_select %p159, %s11, 1
        %s161 = smul.addr %s160, 32
        %s162 = smul.addr %s161, 4
        %s163 = scalar_lea.vmem %s0, %s162
      $region28: #{_lambda_.1} parent=23 // pred_fallthru
        _
    $region24: #{_lambda_.1} parent=5 // pred_fallthru
      _
    %p164 = scmp.le.s32.totalorder 1, %s11
    %p165 = scmp.lt.s32.totalorder %s11, 3
    %p166 = pnand %p164, %p165
    %p167 = pneg %p166
    // Predicated region
    $region29: #{_lambda_.1} parent=5 // pred_check
      _
    $region30: #{_lambda_.1} parent=5 // pred_check_branch
      %169 = sbr.rel (%p166) target = $region32
    $region31: #{_lambda_.1} parent=5 // pred_region
      %s170 = ssub.s32 %s11, 1
      %p171 = scmp.lt.s32.totalorder %s16, 1
      %s172 = scalar_select %p171, %s16, 1
      %s173 = smul.addr %s172, 32
      %s174 = smul.addr %s173, 4
      %s175 = scalar_lea.vmem %s0, %s174
      %p176 = pneg %p37
      %p177 = pneg %p34
      %p178 = pneg %p58
      %p179 = pneg %p55
      %p180 = pneg %p79
      %p181 = pneg %p76
      %p182 = pneg %p105
      %p183 = pneg %p102
      %p184 = scmp.lt.s32.totalorder %s16, 1
      %s185 = scalar_select %p184, %s16, 1
      %s186 = smul.addr %s185, 2
      %s187 = smul.addr %s186, 4
      %s188 = scalar_lea.vmem %s3, %s187
      %p189 = pneg %p131
      %p190 = pneg %p128
      %p191 = scmp.lt.s32.totalorder %s16, 1
      %s192 = scalar_select %p191, %s16, 1
      %s193 = smul.addr %s192, 2
      %s194 = smul.addr %s193, 8
      %s195 = scalar_lea.vmem %s4, %s194
      %p196 = scmp.lt.s32.totalorder %s16, 1
      %s197 = scalar_select %p196, %s16, 1
      %s198 = smul.addr %s197, 32
      %s199 = smul.addr %s198, 4
      %s200 = scalar_lea.vmem %s0, %s199
      %p201 = scmp.lt.s32.totalorder %s16, 1
      %s202 = scalar_select %p201, %s16, 1
      %s203 = smul.addr %s202, 2
      %s204 = smul.addr %s203, 4
      %s205 = scalar_lea.vmem %s3, %s204
      %p206 = scmp.lt.s32.totalorder %s16, 1
      %s207 = scalar_select %p206, %s16, 1
      %s208 = smul.addr %s207, 2
      %s209 = smul.addr %s208, 8
      %s210 = scalar_lea.vmem %s4, %s209
      %v212 = vld [vmem:[%s200] sm:$0xf]
      %v213 = vld [vmem:[%s200 + $0x4] sm:$0x1]
      %v214 = vld [vmem:[%s200 + $0x8] sm:$0xf]
      %v215 = vld [vmem:[%s200 + $0xc] sm:$0x1]
      %v216 = vld [vmem:[%s200 + $0x10] sm:$0xf]
      %v217 = vld [vmem:[%s200 + $0x14] sm:$0x1]
      %v218 = vld [vmem:[%s200 + $0x18] sm:$0xf]
      %v219 = vld [vmem:[%s200 + $0x1c] sm:$0x1]
      %v220 = vld [vmem:[%s200 + $0x20] sm:$0xf]
      %v221 = vld [vmem:[%s200 + $0x24] sm:$0x1]
      %v222 = vld [vmem:[%s200 + $0x28] sm:$0xf]
      %v223 = vld [vmem:[%s200 + $0x2c] sm:$0x1]
      %v224 = vld [vmem:[%s200 + $0x30] sm:$0xf]
      %v225 = vld [vmem:[%s200 + $0x34] sm:$0x1]
      %v226 = vld [vmem:[%s200 + $0x38] sm:$0xf]
      %v227 = vld [vmem:[%s200 + $0x3c] sm:$0x1]
      %v228 = vld [vmem:[%s200 + $0x40] sm:$0xf]
      %v229 = vld [vmem:[%s200 + $0x44] sm:$0x1]
      %v230 = vld [vmem:[%s200 + $0x48] sm:$0xf]
      %v231 = vld [vmem:[%s200 + $0x4c] sm:$0x1]
      %v232 = vld [vmem:[%s200 + $0x50] sm:$0xf]
      %v233 = vld [vmem:[%s200 + $0x54] sm:$0x1]
      %v234 = vld [vmem:[%s200 + $0x58] sm:$0xf]
      %v235 = vld [vmem:[%s200 + $0x5c] sm:$0x1]
      %v236 = vld [vmem:[%s200 + $0x60] sm:$0xf]
      %v237 = vld [vmem:[%s200 + $0x64] sm:$0x1]
      %v238 = vld [vmem:[%s200 + $0x68] sm:$0xf]
      %v239 = vld [vmem:[%s200 + $0x6c] sm:$0x1]
      %v240 = vld [vmem:[%s200 + $0x70] sm:$0xf]
      %v241 = vld [vmem:[%s200 + $0x74] sm:$0x1]
      %v242 = vld [vmem:[%s200 + $0x78] sm:$0xf]
      %v243 = vld [vmem:[%s200 + $0x7c] sm:$0x1]
      %v244 = vunpack.c.l.bf16 %v212
      %v245 = vunpack.c.l.bf16 %v213
      %v246 = vunpack.c.l.bf16 %v214
      %v247 = vunpack.c.l.bf16 %v215
      %v248 = vunpack.c.l.bf16 %v216
      %v249 = vunpack.c.l.bf16 %v217
      %v250 = vunpack.c.l.bf16 %v218
      %v251 = vunpack.c.l.bf16 %v219
      %v252 = vunpack.c.l.bf16 %v220
      %v253 = vunpack.c.l.bf16 %v221
      %v254 = vunpack.c.l.bf16 %v222
      %v255 = vunpack.c.l.bf16 %v223
      %v256 = vunpack.c.l.bf16 %v224
      %v257 = vunpack.c.l.bf16 %v225
      %v258 = vunpack.c.l.bf16 %v226
      %v259 = vunpack.c.l.bf16 %v227
      %v260 = vunpack.c.l.bf16 %v228
      %v261 = vunpack.c.l.bf16 %v229
      %v262 = vunpack.c.l.bf16 %v230
      %v263 = vunpack.c.l.bf16 %v231
      %v264 = vunpack.c.l.bf16 %v232
      %v265 = vunpack.c.l.bf16 %v233
      %v266 = vunpack.c.l.bf16 %v234
      %v267 = vunpack.c.l.bf16 %v235
      %v268 = vunpack.c.l.bf16 %v236
      %v269 = vunpack.c.l.bf16 %v237
      %v270 = vunpack.c.l.bf16 %v238
      %v271 = vunpack.c.l.bf16 %v239
      %v272 = vunpack.c.l.bf16 %v240
      %v273 = vunpack.c.l.bf16 %v241
      %v274 = vunpack.c.l.bf16 %v242
      %v275 = vunpack.c.l.bf16 %v243
      %vm276 = vcmp.gt.f32.partialorder %v244, 0.0
      %vm277 = vcmp.gt.f32.partialorder %v245, 0.0
      %vm278 = vcmp.gt.f32.partialorder %v246, 0.0
      %vm279 = vcmp.gt.f32.partialorder %v247, 0.0
      %vm280 = vcmp.gt.f32.partialorder %v248, 0.0
      %vm281 = vcmp.gt.f32.partialorder %v249, 0.0
      %vm282 = vcmp.gt.f32.partialorder %v250, 0.0
      %vm283 = vcmp.gt.f32.partialorder %v251, 0.0
      %vm284 = vcmp.gt.f32.partialorder %v252, 0.0
      %vm285 = vcmp.gt.f32.partialorder %v253, 0.0
      %vm286 = vcmp.gt.f32.partialorder %v254, 0.0
      %vm287 = vcmp.gt.f32.partialorder %v255, 0.0
      %vm288 = vcmp.gt.f32.partialorder %v256, 0.0
      %vm289 = vcmp.gt.f32.partialorder %v257, 0.0
      %vm290 = vcmp.gt.f32.partialorder %v258, 0.0
      %vm291 = vcmp.gt.f32.partialorder %v259, 0.0
      %vm292 = vcmp.gt.f32.partialorder %v260, 0.0
      %vm293 = vcmp.gt.f32.partialorder %v261, 0.0
      %vm294 = vcmp.gt.f32.partialorder %v262, 0.0
      %vm295 = vcmp.gt.f32.partialorder %v263, 0.0
      %vm296 = vcmp.gt.f32.partialorder %v264, 0.0
      %vm297 = vcmp.gt.f32.partialorder %v265, 0.0
      %vm298 = vcmp.gt.f32.partialorder %v266, 0.0
      %vm299 = vcmp.gt.f32.partialorder %v267, 0.0
      %vm300 = vcmp.gt.f32.partialorder %v268, 0.0
      %vm301 = vcmp.gt.f32.partialorder %v269, 0.0
      %vm302 = vcmp.gt.f32.partialorder %v270, 0.0
      %vm303 = vcmp.gt.f32.partialorder %v271, 0.0
      %vm304 = vcmp.gt.f32.partialorder %v272, 0.0
      %vm305 = vcmp.gt.f32.partialorder %v273, 0.0
      %vm306 = vcmp.gt.f32.partialorder %v274, 0.0
      %vm307 = vcmp.gt.f32.partialorder %v275, 0.0
      %v308 = vmul.f32 %v244, 0.2
      %v309 = vmul.f32 %v245, 0.2
      %v310 = vmul.f32 %v246, 0.2
      %v311 = vmul.f32 %v247, 0.2
      %v312 = vmul.f32 %v248, 0.2
      %v313 = vmul.f32 %v249, 0.2
      %v314 = vmul.f32 %v250, 0.2
      %v315 = vmul.f32 %v251, 0.2
      %v316 = vmul.f32 %v252, 0.2
      %v317 = vmul.f32 %v253, 0.2
      %v318 = vmul.f32 %v254, 0.2
      %v319 = vmul.f32 %v255, 0.2
      %v320 = vmul.f32 %v256, 0.2
      %v321 = vmul.f32 %v257, 0.2
      %v322 = vmul.f32 %v258, 0.2
      %v323 = vmul.f32 %v259, 0.2
      %v324 = vmul.f32 %v260, 0.2
      %v325 = vmul.f32 %v261, 0.2
      %v326 = vmul.f32 %v262, 0.2
      %v327 = vmul.f32 %v263, 0.2
      %v328 = vmul.f32 %v264, 0.2
      %v329 = vmul.f32 %v265, 0.2
      %v330 = vmul.f32 %v266, 0.2
      %v331 = vmul.f32 %v267, 0.2
      %v332 = vmul.f32 %v268, 0.2
      %v333 = vmul.f32 %v269, 0.2
      %v334 = vmul.f32 %v270, 0.2
      %v335 = vmul.f32 %v271, 0.2
      %v336 = vmul.f32 %v272, 0.2
      %v337 = vmul.f32 %v273, 0.2
      %v338 = vmul.f32 %v274, 0.2
      %v339 = vmul.f32 %v275, 0.2
      %v340 = vsel %vm276, %v244, %v308
      %v341 = vsel %vm277, %v245, %v309
      %v342 = vsel %vm278, %v246, %v310
      %v343 = vsel %vm279, %v247, %v311
      %v344 = vsel %vm280, %v248, %v312
      %v345 = vsel %vm281, %v249, %v313
      %v346 = vsel %vm282, %v250, %v314
      %v347 = vsel %vm283, %v251, %v315
      %v348 = vsel %vm284, %v252, %v316
      %v349 = vsel %vm285, %v253, %v317
      %v350 = vsel %vm286, %v254, %v318
      %v351 = vsel %vm287, %v255, %v319
      %v352 = vsel %vm288, %v256, %v320
      %v353 = vsel %vm289, %v257, %v321
      %v354 = vsel %vm290, %v258, %v322
      %v355 = vsel %vm291, %v259, %v323
      %v356 = vsel %vm292, %v260, %v324
      %v357 = vsel %vm293, %v261, %v325
      %v358 = vsel %vm294, %v262, %v326
      %v359 = vsel %vm295, %v263, %v327
      %v360 = vsel %vm296, %v264, %v328
      %v361 = vsel %vm297, %v265, %v329
      %v362 = vsel %vm298, %v266, %v330
      %v363 = vsel %vm299, %v267, %v331
      %v364 = vsel %vm300, %v268, %v332
      %v365 = vsel %vm301, %v269, %v333
      %v366 = vsel %vm302, %v270, %v334
      %v367 = vsel %vm303, %v271, %v335
      %v368 = vsel %vm304, %v272, %v336
      %v369 = vsel %vm305, %v273, %v337
      %v370 = vsel %vm306, %v274, %v338
      %v371 = vsel %vm307, %v275, %v339
      %v372 = vpack.c.bf16 %v341, %v340
      %v373 = vpack.c.bf16 %v343, %v342
      %v374 = vpack.c.bf16 %v345, %v344
      %v375 = vpack.c.bf16 %v347, %v346
      %v376 = vpack.c.bf16 %v349, %v348
      %v377 = vpack.c.bf16 %v351, %v350
      %v378 = vpack.c.bf16 %v353, %v352
      %v379 = vpack.c.bf16 %v355, %v354
      %v380 = vpack.c.bf16 %v357, %v356
      %v381 = vpack.c.bf16 %v359, %v358
      %v382 = vpack.c.bf16 %v361, %v360
      %v383 = vpack.c.bf16 %v363, %v362
      %v384 = vpack.c.bf16 %v365, %v364
      %v385 = vpack.c.bf16 %v367, %v366
      %v386 = vpack.c.bf16 %v369, %v368
      %v387 = vpack.c.bf16 %v371, %v370
      %v388 = vcombine.low %v372, %v376
      %v390 = vunpack.c.l.s4 1983009808
      %v391 = vunpack.c.0.s8 %v390
      %v392 = vlaneseq
      %v393 = vshrl.u32 %v392, 7
      %v394 = vsub.s32 %v391, %v393
      %v395 = vrot.slane %v388, %v394
      %v396 = vcombine.low %v374, %v378
      %v398 = vunpack.c.l.s4 1983009808
      %v399 = vunpack.c.0.s8 %v398
      %v400 = vlaneseq
      %v401 = vshrl.u32 %v400, 7
      %v402 = vsub.s32 %v399, %v401
      %v403 = vrot.slane %v396, %v402
      %v404 = vcombine.low %v380, %v384
      %v406 = vunpack.c.l.s4 1983009808
      %v407 = vunpack.c.0.s8 %v406
      %v408 = vlaneseq
      %v409 = vshrl.u32 %v408, 7
      %v410 = vsub.s32 %v407, %v409
      %v411 = vrot.slane %v404, %v410
      %v412 = vcombine.low %v382, %v386
      %v414 = vunpack.c.l.s4 1983009808
      %v415 = vunpack.c.0.s8 %v414
      %v416 = vlaneseq
      %v417 = vshrl.u32 %v416, 7
      %v418 = vsub.s32 %v415, %v417
      %v419 = vrot.slane %v412, %v418
      %v420 = vcombine.low %v395, %v403
      %v421 = vcombine.high %v395, %v403
      %v423 = vunpack.c.l.s4 1934713408
      %v424 = vunpack.c.0.s8 %v423
      %v425 = vlaneseq
      %v426 = vshrl.u32 %v425, 7
      %v427 = vsub.s32 %v424, %v426
      %v428 = vrot.slane %v420, %v427
      %v430 = vunpack.c.l.s4 1934713408
      %v431 = vunpack.c.0.s8 %v430
      %v432 = vlaneseq
      %v433 = vshrl.u32 %v432, 7
      %v434 = vsub.s32 %v431, %v433
      %v435 = vrot.slane %v421, %v434
      %v436 = vcombine.low %v411, %v419
      %v437 = vcombine.high %v411, %v419
      %v439 = vunpack.c.l.s4 1934713408
      %v440 = vunpack.c.0.s8 %v439
      %v441 = vlaneseq
      %v442 = vshrl.u32 %v441, 7
      %v443 = vsub.s32 %v440, %v442
      %v444 = vrot.slane %v436, %v443
      %v446 = vunpack.c.l.s4 1934713408
      %v447 = vunpack.c.0.s8 %v446
      %v448 = vlaneseq
      %v449 = vshrl.u32 %v448, 7
      %v450 = vsub.s32 %v447, %v449
      %v451 = vrot.slane %v437, %v450
      %v452 = vcombine.low %v428, %v444
      %v453 = vcombine.high %v428, %v444
      %v454 = vcombine.low %v435, %v451
      %v455 = vcombine.high %v435, %v451
      %v456 = vcombine.low %v373, %v377
      %v458 = vunpack.c.l.s4 1983009808
      %v459 = vunpack.c.0.s8 %v458
      %v460 = vlaneseq
      %v461 = vshrl.u32 %v460, 7
      %v462 = vsub.s32 %v459, %v461
      %v463 = vrot.slane %v456, %v462
      %v464 = vcombine.low %v375, %v379
      %v466 = vunpack.c.l.s4 1983009808
      %v467 = vunpack.c.0.s8 %v466
      %v468 = vlaneseq
      %v469 = vshrl.u32 %v468, 7
      %v470 = vsub.s32 %v467, %v469
      %v471 = vrot.slane %v464, %v470
      %v472 = vcombine.low %v381, %v385
      %v474 = vunpack.c.l.s4 1983009808
      %v475 = vunpack.c.0.s8 %v474
      %v476 = vlaneseq
      %v477 = vshrl.u32 %v476, 7
      %v478 = vsub.s32 %v475, %v477
      %v479 = vrot.slane %v472, %v478
      %v480 = vcombine.low %v383, %v387
      %v482 = vunpack.c.l.s4 1983009808
      %v483 = vunpack.c.0.s8 %v482
      %v484 = vlaneseq
      %v485 = vshrl.u32 %v484, 7
      %v486 = vsub.s32 %v483, %v485
      %v487 = vrot.slane %v480, %v486
      %v488 = vcombine.low %v463, %v471
      %v489 = vcombine.high %v463, %v471
      %v491 = vunpack.c.l.s4 1934713408
      %v492 = vunpack.c.0.s8 %v491
      %v493 = vlaneseq
      %v494 = vshrl.u32 %v493, 7
      %v495 = vsub.s32 %v492, %v494
      %v496 = vrot.slane %v488, %v495
      %v498 = vunpack.c.l.s4 1934713408
      %v499 = vunpack.c.0.s8 %v498
      %v500 = vlaneseq
      %v501 = vshrl.u32 %v500, 7
      %v502 = vsub.s32 %v499, %v501
      %v503 = vrot.slane %v489, %v502
      %v504 = vcombine.low %v479, %v487
      %v505 = vcombine.high %v479, %v487
      %v507 = vunpack.c.l.s4 1934713408
      %v508 = vunpack.c.0.s8 %v507
      %v509 = vlaneseq
      %v510 = vshrl.u32 %v509, 7
      %v511 = vsub.s32 %v508, %v510
      %v512 = vrot.slane %v504, %v511
      %v514 = vunpack.c.l.s4 1934713408
      %v515 = vunpack.c.0.s8 %v514
      %v516 = vlaneseq
      %v517 = vshrl.u32 %v516, 7
      %v518 = vsub.s32 %v515, %v517
      %v519 = vrot.slane %v505, %v518
      %v520 = vcombine.low %v496, %v512
      %v521 = vcombine.high %v496, %v512
      %v522 = vcombine.low %v503, %v519
      %v523 = vcombine.high %v503, %v519
      %v526 = vpack.i.b16 %v520, %v452
      %v527 = vshrl.u32 %v452, 16
      %v528 = vshrl.u32 %v520, 16
      %v529 = vpack.i.b16 %v528, %v527
      %v532 = vpack.i.b16 %v521, %v453
      %v533 = vshrl.u32 %v453, 16
      %v534 = vshrl.u32 %v521, 16
      %v535 = vpack.i.b16 %v534, %v533
      %v538 = vpack.i.b16 %v522, %v454
      %v539 = vshrl.u32 %v454, 16
      %v540 = vshrl.u32 %v522, 16
      %v541 = vpack.i.b16 %v540, %v539
      %v544 = vpack.i.b16 %v523, %v455
      %v545 = vshrl.u32 %v455, 16
      %v546 = vshrl.u32 %v523, 16
      %v547 = vpack.i.b16 %v546, %v545
      %548 = vrot.lane.b32.xlu0 %v529, 8
      %v549 = vpop.permute.xlu0 %548
      %550 = vrot.lane.b32.xlu0 %v532, 16
      %v551 = vpop.permute.xlu0 %550
      %552 = vrot.lane.b32.xlu0 %v535, 24
      %v553 = vpop.permute.xlu0 %552
      %554 = vrot.lane.b32.xlu0 %v538, 32
      %v555 = vpop.permute.xlu0 %554
      %556 = vrot.lane.b32.xlu0 %v541, 40
      %v557 = vpop.permute.xlu0 %556
      %558 = vrot.lane.b32.xlu0 %v544, 48
      %v559 = vpop.permute.xlu0 %558
      %560 = vrot.lane.b32.xlu0 %v547, 56
      %v561 = vpop.permute.xlu0 %560
      %vm562 = vcmask 64512
      %v565 = vsel %vm562, %v526, %v549
      %vm566 = vcmask 130048
      %v568 = vsel %vm566, %v565, %v551
      %vm569 = vcmask 195584
      %v571 = vsel %vm569, %v568, %v553
      %vm572 = vcmask 261120
      %v574 = vsel %vm572, %v571, %v555
      %vm575 = vcmask 326656
      %v577 = vsel %vm575, %v574, %v557
      %vm578 = vcmask 392192
      %v580 = vsel %vm578, %v577, %v559
      %vm581 = vcmask 457728
      %v583 = vsel %vm581, %v580, %v561
      %601 = vrot.lane.b32.xlu0 %v372, 127
      %v602 = vpop.permute.xlu0 %601
      %603 = vrot.lane.b32.xlu0 %v373, 127
      %v604 = vpop.permute.xlu0 %603
      %605 = vrot.lane.b32.xlu0 %v374, 127
      %v606 = vpop.permute.xlu0 %605
      %607 = vrot.lane.b32.xlu0 %v375, 127
      %v608 = vpop.permute.xlu0 %607
      %609 = vrot.lane.b32.xlu0 %v376, 127
      %v610 = vpop.permute.xlu0 %609
      %611 = vrot.lane.b32.xlu0 %v377, 127
      %v612 = vpop.permute.xlu0 %611
      %613 = vrot.lane.b32.xlu0 %v378, 127
      %v614 = vpop.permute.xlu0 %613
      %615 = vrot.lane.b32.xlu0 %v379, 127
      %v616 = vpop.permute.xlu0 %615
      %617 = vrot.lane.b32.xlu0 %v380, 127
      %v618 = vpop.permute.xlu0 %617
      %619 = vrot.lane.b32.xlu0 %v381, 127
      %v620 = vpop.permute.xlu0 %619
      %621 = vrot.lane.b32.xlu0 %v382, 127
      %v622 = vpop.permute.xlu0 %621
      %623 = vrot.lane.b32.xlu0 %v383, 127
      %v624 = vpop.permute.xlu0 %623
      %625 = vrot.lane.b32.xlu0 %v384, 127
      %v626 = vpop.permute.xlu0 %625
      %627 = vrot.lane.b32.xlu0 %v385, 127
      %v628 = vpop.permute.xlu0 %627
      %629 = vrot.lane.b32.xlu0 %v386, 127
      %v630 = vpop.permute.xlu0 %629
      %631 = vrot.lane.b32.xlu0 %v387, 127
      %v632 = vpop.permute.xlu0 %631
      %v649 = vcombine.low %v602, %v610
      %v651 = vunpack.c.l.s4 1983009808
      %v652 = vunpack.c.0.s8 %v651
      %v653 = vlaneseq
      %v654 = vshrl.u32 %v653, 7
      %v655 = vsub.s32 %v652, %v654
      %v656 = vrot.slane %v649, %v655
      %v657 = vcombine.low %v606, %v614
      %v659 = vunpack.c.l.s4 1983009808
      %v660 = vunpack.c.0.s8 %v659
      %v661 = vlaneseq
      %v662 = vshrl.u32 %v661, 7
      %v663 = vsub.s32 %v660, %v662
      %v664 = vrot.slane %v657, %v663
      %v665 = vcombine.low %v618, %v626
      %v667 = vunpack.c.l.s4 1983009808
      %v668 = vunpack.c.0.s8 %v667
      %v669 = vlaneseq
      %v670 = vshrl.u32 %v669, 7
      %v671 = vsub.s32 %v668, %v670
      %v672 = vrot.slane %v665, %v671
      %v673 = vcombine.low %v622, %v630
      %v675 = vunpack.c.l.s4 1983009808
      %v676 = vunpack.c.0.s8 %v675
      %v677 = vlaneseq
      %v678 = vshrl.u32 %v677, 7
      %v679 = vsub.s32 %v676, %v678
      %v680 = vrot.slane %v673, %v679
      %v681 = vcombine.low %v656, %v664
      %v682 = vcombine.high %v656, %v664
      %v684 = vunpack.c.l.s4 1934713408
      %v685 = vunpack.c.0.s8 %v684
      %v686 = vlaneseq
      %v687 = vshrl.u32 %v686, 7
      %v688 = vsub.s32 %v685, %v687
      %v689 = vrot.slane %v681, %v688
      %v691 = vunpack.c.l.s4 1934713408
      %v692 = vunpack.c.0.s8 %v691
      %v693 = vlaneseq
      %v694 = vshrl.u32 %v693, 7
      %v695 = vsub.s32 %v692, %v694
      %v696 = vrot.slane %v682, %v695
      %v697 = vcombine.low %v672, %v680
      %v698 = vcombine.high %v672, %v680
      %v700 = vunpack.c.l.s4 1934713408
      %v701 = vunpack.c.0.s8 %v700
      %v702 = vlaneseq
      %v703 = vshrl.u32 %v702, 7
      %v704 = vsub.s32 %v701, %v703
      %v705 = vrot.slane %v697, %v704
      %v707 = vunpack.c.l.s4 1934713408
      %v708 = vunpack.c.0.s8 %v707
      %v709 = vlaneseq
      %v710 = vshrl.u32 %v709, 7
      %v711 = vsub.s32 %v708, %v710
      %v712 = vrot.slane %v698, %v711
      %v713 = vcombine.low %v689, %v705
      %v714 = vcombine.high %v689, %v705
      %v715 = vcombine.low %v696, %v712
      %v716 = vcombine.high %v696, %v712
      %v717 = vcombine.low %v604, %v612
      %v719 = vunpack.c.l.s4 1983009808
      %v720 = vunpack.c.0.s8 %v719
      %v721 = vlaneseq
      %v722 = vshrl.u32 %v721, 7
      %v723 = vsub.s32 %v720, %v722
      %v724 = vrot.slane %v717, %v723
      %v725 = vcombine.low %v608, %v616
      %v727 = vunpack.c.l.s4 1983009808
      %v728 = vunpack.c.0.s8 %v727
      %v729 = vlaneseq
      %v730 = vshrl.u32 %v729, 7
      %v731 = vsub.s32 %v728, %v730
      %v732 = vrot.slane %v725, %v731
      %v733 = vcombine.low %v620, %v628
      %v735 = vunpack.c.l.s4 1983009808
      %v736 = vunpack.c.0.s8 %v735
      %v737 = vlaneseq
      %v738 = vshrl.u32 %v737, 7
      %v739 = vsub.s32 %v736, %v738
      %v740 = vrot.slane %v733, %v739
      %v741 = vcombine.low %v624, %v632
      %v743 = vunpack.c.l.s4 1983009808
      %v744 = vunpack.c.0.s8 %v743
      %v745 = vlaneseq
      %v746 = vshrl.u32 %v745, 7
      %v747 = vsub.s32 %v744, %v746
      %v748 = vrot.slane %v741, %v747
      %v749 = vcombine.low %v724, %v732
      %v750 = vcombine.high %v724, %v732
      %v752 = vunpack.c.l.s4 1934713408
      %v753 = vunpack.c.0.s8 %v752
      %v754 = vlaneseq
      %v755 = vshrl.u32 %v754, 7
      %v756 = vsub.s32 %v753, %v755
      %v757 = vrot.slane %v749, %v756
      %v759 = vunpack.c.l.s4 1934713408
      %v760 = vunpack.c.0.s8 %v759
      %v761 = vlaneseq
      %v762 = vshrl.u32 %v761, 7
      %v763 = vsub.s32 %v760, %v762
      %v764 = vrot.slane %v750, %v763
      %v765 = vcombine.low %v740, %v748
      %v766 = vcombine.high %v740, %v748
      %v768 = vunpack.c.l.s4 1934713408
      %v769 = vunpack.c.0.s8 %v768
      %v770 = vlaneseq
      %v771 = vshrl.u32 %v770, 7
      %v772 = vsub.s32 %v769, %v771
      %v773 = vrot.slane %v765, %v772
      %v775 = vunpack.c.l.s4 1934713408
      %v776 = vunpack.c.0.s8 %v775
      %v777 = vlaneseq
      %v778 = vshrl.u32 %v777, 7
      %v779 = vsub.s32 %v776, %v778
      %v780 = vrot.slane %v766, %v779
      %v781 = vcombine.low %v757, %v773
      %v782 = vcombine.high %v757, %v773
      %v783 = vcombine.low %v764, %v780
      %v784 = vcombine.high %v764, %v780
      %v787 = vpack.i.b16 %v781, %v713
      %v788 = vshrl.u32 %v713, 16
      %v789 = vshrl.u32 %v781, 16
      %v790 = vpack.i.b16 %v789, %v788
      %v793 = vpack.i.b16 %v782, %v714
      %v794 = vshrl.u32 %v714, 16
      %v795 = vshrl.u32 %v782, 16
      %v796 = vpack.i.b16 %v795, %v794
      %v799 = vpack.i.b16 %v783, %v715
      %v800 = vshrl.u32 %v715, 16
      %v801 = vshrl.u32 %v783, 16
      %v802 = vpack.i.b16 %v801, %v800
      %v805 = vpack.i.b16 %v784, %v716
      %v806 = vshrl.u32 %v716, 16
      %v807 = vshrl.u32 %v784, 16
      %v808 = vpack.i.b16 %v807, %v806
      %809 = vrot.lane.b32.xlu0 %v790, 8
      %v810 = vpop.permute.xlu0 %809
      %811 = vrot.lane.b32.xlu0 %v793, 16
      %v812 = vpop.permute.xlu0 %811
      %813 = vrot.lane.b32.xlu0 %v796, 24
      %v814 = vpop.permute.xlu0 %813
      %815 = vrot.lane.b32.xlu0 %v799, 32
      %v816 = vpop.permute.xlu0 %815
      %817 = vrot.lane.b32.xlu0 %v802, 40
      %v818 = vpop.permute.xlu0 %817
      %819 = vrot.lane.b32.xlu0 %v805, 48
      %v820 = vpop.permute.xlu0 %819
      %821 = vrot.lane.b32.xlu0 %v808, 56
      %v822 = vpop.permute.xlu0 %821
      %v825 = vsel %vm562, %v787, %v810
      %v827 = vsel %vm566, %v825, %v812
      %v829 = vsel %vm569, %v827, %v814
      %v831 = vsel %vm572, %v829, %v816
      %v833 = vsel %vm575, %v831, %v818
      %v835 = vsel %vm578, %v833, %v820
      %v837 = vsel %vm581, %v835, %v822
      %v840 = vshrl.u32 %v372, 16
      %v842 = vshll.u32 %v372, 16
      %v844 = vrot.slane %v842, 1
      %v845 = vor.u32 %v840, %v844
      %v847 = vshrl.u32 %v373, 16
      %v849 = vshll.u32 %v373, 16
      %v851 = vrot.slane %v849, 1
      %v852 = vor.u32 %v847, %v851
      %v854 = vshrl.u32 %v374, 16
      %v856 = vshll.u32 %v374, 16
      %v858 = vrot.slane %v856, 1
      %v859 = vor.u32 %v854, %v858
      %v861 = vshrl.u32 %v375, 16
      %v863 = vshll.u32 %v375, 16
      %v865 = vrot.slane %v863, 1
      %v866 = vor.u32 %v861, %v865
      %v868 = vshrl.u32 %v376, 16
      %v870 = vshll.u32 %v376, 16
      %v872 = vrot.slane %v870, 1
      %v873 = vor.u32 %v868, %v872
      %v875 = vshrl.u32 %v377, 16
      %v877 = vshll.u32 %v377, 16
      %v879 = vrot.slane %v877, 1
      %v880 = vor.u32 %v875, %v879
      %v882 = vshrl.u32 %v378, 16
      %v884 = vshll.u32 %v378, 16
      %v886 = vrot.slane %v884, 1
      %v887 = vor.u32 %v882, %v886
      %v889 = vshrl.u32 %v379, 16
      %v891 = vshll.u32 %v379, 16
      %v893 = vrot.slane %v891, 1
      %v894 = vor.u32 %v889, %v893
      %v896 = vshrl.u32 %v380, 16
      %v898 = vshll.u32 %v380, 16
      %v900 = vrot.slane %v898, 1
      %v901 = vor.u32 %v896, %v900
      %v903 = vshrl.u32 %v381, 16
      %v905 = vshll.u32 %v381, 16
      %v907 = vrot.slane %v905, 1
      %v908 = vor.u32 %v903, %v907
      %v910 = vshrl.u32 %v382, 16
      %v912 = vshll.u32 %v382, 16
      %v914 = vrot.slane %v912, 1
      %v915 = vor.u32 %v910, %v914
      %v917 = vshrl.u32 %v383, 16
      %v919 = vshll.u32 %v383, 16
      %v921 = vrot.slane %v919, 1
      %v922 = vor.u32 %v917, %v921
      %v924 = vshrl.u32 %v384, 16
      %v926 = vshll.u32 %v384, 16
      %v928 = vrot.slane %v926, 1
      %v929 = vor.u32 %v924, %v928
      %v931 = vshrl.u32 %v385, 16
      %v933 = vshll.u32 %v385, 16
      %v935 = vrot.slane %v933, 1
      %v936 = vor.u32 %v931, %v935
      %v938 = vshrl.u32 %v386, 16
      %v940 = vshll.u32 %v386, 16
      %v942 = vrot.slane %v940, 1
      %v943 = vor.u32 %v938, %v942
      %v945 = vshrl.u32 %v387, 16
      %v947 = vshll.u32 %v387, 16
      %v949 = vrot.slane %v947, 1
      %v950 = vor.u32 %v945, %v949
      %v967 = vcombine.low %v845, %v873
      %v969 = vunpack.c.l.s4 1983009808
      %v970 = vunpack.c.0.s8 %v969
      %v971 = vlaneseq
      %v972 = vshrl.u32 %v971, 7
      %v973 = vsub.s32 %v970, %v972
      %v974 = vrot.slane %v967, %v973
      %v975 = vcombine.low %v859, %v887
      %v977 = vunpack.c.l.s4 1983009808
      %v978 = vunpack.c.0.s8 %v977
      %v979 = vlaneseq
      %v980 = vshrl.u32 %v979, 7
      %v981 = vsub.s32 %v978, %v980
      %v982 = vrot.slane %v975, %v981
      %v983 = vcombine.low %v901, %v929
      %v985 = vunpack.c.l.s4 1983009808
      %v986 = vunpack.c.0.s8 %v985
      %v987 = vlaneseq
      %v988 = vshrl.u32 %v987, 7
      %v989 = vsub.s32 %v986, %v988
      %v990 = vrot.slane %v983, %v989
      %v991 = vcombine.low %v915, %v943
      %v993 = vunpack.c.l.s4 1983009808
      %v994 = vunpack.c.0.s8 %v993
      %v995 = vlaneseq
      %v996 = vshrl.u32 %v995, 7
      %v997 = vsub.s32 %v994, %v996
      %v998 = vrot.slane %v991, %v997
      %v999 = vcombine.low %v974, %v982
      %v1000 = vcombine.high %v974, %v982
      %v1002 = vunpack.c.l.s4 1934713408
      %v1003 = vunpack.c.0.s8 %v1002
      %v1004 = vlaneseq
      %v1005 = vshrl.u32 %v1004, 7
      %v1006 = vsub.s32 %v1003, %v1005
      %v1007 = vrot.slane %v999, %v1006
      %v1009 = vunpack.c.l.s4 1934713408
      %v1010 = vunpack.c.0.s8 %v1009
      %v1011 = vlaneseq
      %v1012 = vshrl.u32 %v1011, 7
      %v1013 = vsub.s32 %v1010, %v1012
      %v1014 = vrot.slane %v1000, %v1013
      %v1015 = vcombine.low %v990, %v998
      %v1016 = vcombine.high %v990, %v998
      %v1018 = vunpack.c.l.s4 1934713408
      %v1019 = vunpack.c.0.s8 %v1018
      %v1020 = vlaneseq
      %v1021 = vshrl.u32 %v1020, 7
      %v1022 = vsub.s32 %v1019, %v1021
      %v1023 = vrot.slane %v1015, %v1022
      %v1025 = vunpack.c.l.s4 1934713408
      %v1026 = vunpack.c.0.s8 %v1025
      %v1027 = vlaneseq
      %v1028 = vshrl.u32 %v1027, 7
      %v1029 = vsub.s32 %v1026, %v1028
      %v1030 = vrot.slane %v1016, %v1029
      %v1031 = vcombine.low %v1007, %v1023
      %v1032 = vcombine.high %v1007, %v1023
      %v1033 = vcombine.low %v1014, %v1030
      %v1034 = vcombine.high %v1014, %v1030
      %v1035 = vcombine.low %v852, %v880
      %v1037 = vunpack.c.l.s4 1983009808
      %v1038 = vunpack.c.0.s8 %v1037
      %v1039 = vlaneseq
      %v1040 = vshrl.u32 %v1039, 7
      %v1041 = vsub.s32 %v1038, %v1040
      %v1042 = vrot.slane %v1035, %v1041
      %v1043 = vcombine.low %v866, %v894
      %v1045 = vunpack.c.l.s4 1983009808
      %v1046 = vunpack.c.0.s8 %v1045
      %v1047 = vlaneseq
      %v1048 = vshrl.u32 %v1047, 7
      %v1049 = vsub.s32 %v1046, %v1048
      %v1050 = vrot.slane %v1043, %v1049
      %v1051 = vcombine.low %v908, %v936
      %v1053 = vunpack.c.l.s4 1983009808
      %v1054 = vunpack.c.0.s8 %v1053
      %v1055 = vlaneseq
      %v1056 = vshrl.u32 %v1055, 7
      %v1057 = vsub.s32 %v1054, %v1056
      %v1058 = vrot.slane %v1051, %v1057
      %v1059 = vcombine.low %v922, %v950
      %v1061 = vunpack.c.l.s4 1983009808
      %v1062 = vunpack.c.0.s8 %v1061
      %v1063 = vlaneseq
      %v1064 = vshrl.u32 %v1063, 7
      %v1065 = vsub.s32 %v1062, %v1064
      %v1066 = vrot.slane %v1059, %v1065
      %v1067 = vcombine.low %v1042, %v1050
      %v1068 = vcombine.high %v1042, %v1050
      %v1070 = vunpack.c.l.s4 1934713408
      %v1071 = vunpack.c.0.s8 %v1070
      %v1072 = vlaneseq
      %v1073 = vshrl.u32 %v1072, 7
      %v1074 = vsub.s32 %v1071, %v1073
      %v1075 = vrot.slane %v1067, %v1074
      %v1077 = vunpack.c.l.s4 1934713408
      %v1078 = vunpack.c.0.s8 %v1077
      %v1079 = vlaneseq
      %v1080 = vshrl.u32 %v1079, 7
      %v1081 = vsub.s32 %v1078, %v1080
      %v1082 = vrot.slane %v1068, %v1081
      %v1083 = vcombine.low %v1058, %v1066
      %v1084 = vcombine.high %v1058, %v1066
      %v1086 = vunpack.c.l.s4 1934713408
      %v1087 = vunpack.c.0.s8 %v1086
      %v1088 = vlaneseq
      %v1089 = vshrl.u32 %v1088, 7
      %v1090 = vsub.s32 %v1087, %v1089
      %v1091 = vrot.slane %v1083, %v1090
      %v1093 = vunpack.c.l.s4 1934713408
      %v1094 = vunpack.c.0.s8 %v1093
      %v1095 = vlaneseq
      %v1096 = vshrl.u32 %v1095, 7
      %v1097 = vsub.s32 %v1094, %v1096
      %v1098 = vrot.slane %v1084, %v1097
      %v1099 = vcombine.low %v1075, %v1091
      %v1100 = vcombine.high %v1075, %v1091
      %v1101 = vcombine.low %v1082, %v1098
      %v1102 = vcombine.high %v1082, %v1098
      %v1105 = vpack.i.b16 %v1099, %v1031
      %v1106 = vshrl.u32 %v1031, 16
      %v1107 = vshrl.u32 %v1099, 16
      %v1108 = vpack.i.b16 %v1107, %v1106
      %v1111 = vpack.i.b16 %v1100, %v1032
      %v1112 = vshrl.u32 %v1032, 16
      %v1113 = vshrl.u32 %v1100, 16
      %v1114 = vpack.i.b16 %v1113, %v1112
      %v1117 = vpack.i.b16 %v1101, %v1033
      %v1118 = vshrl.u32 %v1033, 16
      %v1119 = vshrl.u32 %v1101, 16
      %v1120 = vpack.i.b16 %v1119, %v1118
      %v1123 = vpack.i.b16 %v1102, %v1034
      %v1124 = vshrl.u32 %v1034, 16
      %v1125 = vshrl.u32 %v1102, 16
      %v1126 = vpack.i.b16 %v1125, %v1124
      %1127 = vrot.lane.b32.xlu0 %v1108, 8
      %v1128 = vpop.permute.xlu0 %1127
      %1129 = vrot.lane.b32.xlu0 %v1111, 16
      %v1130 = vpop.permute.xlu0 %1129
      %1131 = vrot.lane.b32.xlu0 %v1114, 24
      %v1132 = vpop.permute.xlu0 %1131
      %1133 = vrot.lane.b32.xlu0 %v1117, 32
      %v1134 = vpop.permute.xlu0 %1133
      %1135 = vrot.lane.b32.xlu0 %v1120, 40
      %v1136 = vpop.permute.xlu0 %1135
      %1137 = vrot.lane.b32.xlu0 %v1123, 48
      %v1138 = vpop.permute.xlu0 %1137
      %1139 = vrot.lane.b32.xlu0 %v1126, 56
      %v1140 = vpop.permute.xlu0 %1139
      %v1143 = vsel %vm562, %v1105, %v1128
      %v1145 = vsel %vm566, %v1143, %v1130
      %v1147 = vsel %vm569, %v1145, %v1132
      %v1149 = vsel %vm572, %v1147, %v1134
      %v1151 = vsel %vm575, %v1149, %v1136
      %v1153 = vsel %vm578, %v1151, %v1138
      %v1155 = vsel %vm581, %v1153, %v1140
      %1157 = vrot.lane.b32.xlu0 %v845, 127
      %v1158 = vpop.permute.xlu0 %1157
      %1159 = vrot.lane.b32.xlu0 %v852, 127
      %v1160 = vpop.permute.xlu0 %1159
      %1161 = vrot.lane.b32.xlu0 %v859, 127
      %v1162 = vpop.permute.xlu0 %1161
      %1163 = vrot.lane.b32.xlu0 %v866, 127
      %v1164 = vpop.permute.xlu0 %1163
      %1165 = vrot.lane.b32.xlu0 %v873, 127
      %v1166 = vpop.permute.xlu0 %1165
      %1167 = vrot.lane.b32.xlu0 %v880, 127
      %v1168 = vpop.permute.xlu0 %1167
      %1169 = vrot.lane.b32.xlu0 %v887, 127
      %v1170 = vpop.permute.xlu0 %1169
      %1171 = vrot.lane.b32.xlu0 %v894, 127
      %v1172 = vpop.permute.xlu0 %1171
      %1173 = vrot.lane.b32.xlu0 %v901, 127
      %v1174 = vpop.permute.xlu0 %1173
      %1175 = vrot.lane.b32.xlu0 %v908, 127
      %v1176 = vpop.permute.xlu0 %1175
      %1177 = vrot.lane.b32.xlu0 %v915, 127
      %v1178 = vpop.permute.xlu0 %1177
      %1179 = vrot.lane.b32.xlu0 %v922, 127
      %v1180 = vpop.permute.xlu0 %1179
      %1181 = vrot.lane.b32.xlu0 %v929, 127
      %v1182 = vpop.permute.xlu0 %1181
      %1183 = vrot.lane.b32.xlu0 %v936, 127
      %v1184 = vpop.permute.xlu0 %1183
      %1185 = vrot.lane.b32.xlu0 %v943, 127
      %v1186 = vpop.permute.xlu0 %1185
      %1187 = vrot.lane.b32.xlu0 %v950, 127
      %v1188 = vpop.permute.xlu0 %1187
      %v1205 = vcombine.low %v1158, %v1166
      %v1207 = vunpack.c.l.s4 1983009808
      %v1208 = vunpack.c.0.s8 %v1207
      %v1209 = vlaneseq
      %v1210 = vshrl.u32 %v1209, 7
      %v1211 = vsub.s32 %v1208, %v1210
      %v1212 = vrot.slane %v1205, %v1211
      %v1213 = vcombine.low %v1162, %v1170
      %v1215 = vunpack.c.l.s4 1983009808
      %v1216 = vunpack.c.0.s8 %v1215
      %v1217 = vlaneseq
      %v1218 = vshrl.u32 %v1217, 7
      %v1219 = vsub.s32 %v1216, %v1218
      %v1220 = vrot.slane %v1213, %v1219
      %v1221 = vcombine.low %v1174, %v1182
      %v1223 = vunpack.c.l.s4 1983009808
      %v1224 = vunpack.c.0.s8 %v1223
      %v1225 = vlaneseq
      %v1226 = vshrl.u32 %v1225, 7
      %v1227 = vsub.s32 %v1224, %v1226
      %v1228 = vrot.slane %v1221, %v1227
      %v1229 = vcombine.low %v1178, %v1186
      %v1231 = vunpack.c.l.s4 1983009808
      %v1232 = vunpack.c.0.s8 %v1231
      %v1233 = vlaneseq
      %v1234 = vshrl.u32 %v1233, 7
      %v1235 = vsub.s32 %v1232, %v1234
      %v1236 = vrot.slane %v1229, %v1235
      %v1237 = vcombine.low %v1212, %v1220
      %v1238 = vcombine.high %v1212, %v1220
      %v1240 = vunpack.c.l.s4 1934713408
      %v1241 = vunpack.c.0.s8 %v1240
      %v1242 = vlaneseq
      %v1243 = vshrl.u32 %v1242, 7
      %v1244 = vsub.s32 %v1241, %v1243
      %v1245 = vrot.slane %v1237, %v1244
      %v1247 = vunpack.c.l.s4 1934713408
      %v1248 = vunpack.c.0.s8 %v1247
      %v1249 = vlaneseq
      %v1250 = vshrl.u32 %v1249, 7
      %v1251 = vsub.s32 %v1248, %v1250
      %v1252 = vrot.slane %v1238, %v1251
      %v1253 = vcombine.low %v1228, %v1236
      %v1254 = vcombine.high %v1228, %v1236
      %v1256 = vunpack.c.l.s4 1934713408
      %v1257 = vunpack.c.0.s8 %v1256
      %v1258 = vlaneseq
      %v1259 = vshrl.u32 %v1258, 7
      %v1260 = vsub.s32 %v1257, %v1259
      %v1261 = vrot.slane %v1253, %v1260
      %v1263 = vunpack.c.l.s4 1934713408
      %v1264 = vunpack.c.0.s8 %v1263
      %v1265 = vlaneseq
      %v1266 = vshrl.u32 %v1265, 7
      %v1267 = vsub.s32 %v1264, %v1266
      %v1268 = vrot.slane %v1254, %v1267
      %v1269 = vcombine.low %v1245, %v1261
      %v1270 = vcombine.high %v1245, %v1261
      %v1271 = vcombine.low %v1252, %v1268
      %v1272 = vcombine.high %v1252, %v1268
      %v1273 = vcombine.low %v1160, %v1168
      %v1275 = vunpack.c.l.s4 1983009808
      %v1276 = vunpack.c.0.s8 %v1275
      %v1277 = vlaneseq
      %v1278 = vshrl.u32 %v1277, 7
      %v1279 = vsub.s32 %v1276, %v1278
      %v1280 = vrot.slane %v1273, %v1279
      %v1281 = vcombine.low %v1164, %v1172
      %v1283 = vunpack.c.l.s4 1983009808
      %v1284 = vunpack.c.0.s8 %v1283
      %v1285 = vlaneseq
      %v1286 = vshrl.u32 %v1285, 7
      %v1287 = vsub.s32 %v1284, %v1286
      %v1288 = vrot.slane %v1281, %v1287
      %v1289 = vcombine.low %v1176, %v1184
      %v1291 = vunpack.c.l.s4 1983009808
      %v1292 = vunpack.c.0.s8 %v1291
      %v1293 = vlaneseq
      %v1294 = vshrl.u32 %v1293, 7
      %v1295 = vsub.s32 %v1292, %v1294
      %v1296 = vrot.slane %v1289, %v1295
      %v1297 = vcombine.low %v1180, %v1188
      %v1299 = vunpack.c.l.s4 1983009808
      %v1300 = vunpack.c.0.s8 %v1299
      %v1301 = vlaneseq
      %v1302 = vshrl.u32 %v1301, 7
      %v1303 = vsub.s32 %v1300, %v1302
      %v1304 = vrot.slane %v1297, %v1303
      %v1305 = vcombine.low %v1280, %v1288
      %v1306 = vcombine.high %v1280, %v1288
      %v1308 = vunpack.c.l.s4 1934713408
      %v1309 = vunpack.c.0.s8 %v1308
      %v1310 = vlaneseq
      %v1311 = vshrl.u32 %v1310, 7
      %v1312 = vsub.s32 %v1309, %v1311
      %v1313 = vrot.slane %v1305, %v1312
      %v1315 = vunpack.c.l.s4 1934713408
      %v1316 = vunpack.c.0.s8 %v1315
      %v1317 = vlaneseq
      %v1318 = vshrl.u32 %v1317, 7
      %v1319 = vsub.s32 %v1316, %v1318
      %v1320 = vrot.slane %v1306, %v1319
      %v1321 = vcombine.low %v1296, %v1304
      %v1322 = vcombine.high %v1296, %v1304
      %v1324 = vunpack.c.l.s4 1934713408
      %v1325 = vunpack.c.0.s8 %v1324
      %v1326 = vlaneseq
      %v1327 = vshrl.u32 %v1326, 7
      %v1328 = vsub.s32 %v1325, %v1327
      %v1329 = vrot.slane %v1321, %v1328
      %v1331 = vunpack.c.l.s4 1934713408
      %v1332 = vunpack.c.0.s8 %v1331
      %v1333 = vlaneseq
      %v1334 = vshrl.u32 %v1333, 7
      %v1335 = vsub.s32 %v1332, %v1334
      %v1336 = vrot.slane %v1322, %v1335
      %v1337 = vcombine.low %v1313, %v1329
      %v1338 = vcombine.high %v1313, %v1329
      %v1339 = vcombine.low %v1320, %v1336
      %v1340 = vcombine.high %v1320, %v1336
      %v1343 = vpack.i.b16 %v1337, %v1269
      %v1344 = vshrl.u32 %v1269, 16
      %v1345 = vshrl.u32 %v1337, 16
      %v1346 = vpack.i.b16 %v1345, %v1344
      %v1349 = vpack.i.b16 %v1338, %v1270
      %v1350 = vshrl.u32 %v1270, 16
      %v1351 = vshrl.u32 %v1338, 16
      %v1352 = vpack.i.b16 %v1351, %v1350
      %v1355 = vpack.i.b16 %v1339, %v1271
      %v1356 = vshrl.u32 %v1271, 16
      %v1357 = vshrl.u32 %v1339, 16
      %v1358 = vpack.i.b16 %v1357, %v1356
      %v1361 = vpack.i.b16 %v1340, %v1272
      %v1362 = vshrl.u32 %v1272, 16
      %v1363 = vshrl.u32 %v1340, 16
      %v1364 = vpack.i.b16 %v1363, %v1362
      %1365 = vrot.lane.b32.xlu0 %v1346, 8
      %v1366 = vpop.permute.xlu0 %1365
      %1367 = vrot.lane.b32.xlu0 %v1349, 16
      %v1368 = vpop.permute.xlu0 %1367
      %1369 = vrot.lane.b32.xlu0 %v1352, 24
      %v1370 = vpop.permute.xlu0 %1369
      %1371 = vrot.lane.b32.xlu0 %v1355, 32
      %v1372 = vpop.permute.xlu0 %1371
      %1373 = vrot.lane.b32.xlu0 %v1358, 40
      %v1374 = vpop.permute.xlu0 %1373
      %1375 = vrot.lane.b32.xlu0 %v1361, 48
      %v1376 = vpop.permute.xlu0 %1375
      %1377 = vrot.lane.b32.xlu0 %v1364, 56
      %v1378 = vpop.permute.xlu0 %1377
      %v1381 = vsel %vm562, %v1343, %v1366
      %v1383 = vsel %vm566, %v1381, %v1368
      %v1385 = vsel %vm569, %v1383, %v1370
      %v1387 = vsel %vm572, %v1385, %v1372
      %v1389 = vsel %vm575, %v1387, %v1374
      %v1391 = vsel %vm578, %v1389, %v1376
      %v1393 = vsel %vm581, %v1391, %v1378
      %v1395 = vld [vmem:[%s1] sm:$0xf]
      %vm1396 = vcmask 523264
      %v1398 = vsel %vm1396, %v1395, 0
      %1400 = vmatprep.subr.bf16.mxu0 0
      %1401 = vmatpush1.bf16.msra.mxu0 0
      %1402 = vmatprep.subr.bf16.mxu0 0
      %1403 = vmatpush1.bf16.msra.mxu0 0
      %1404 = vmatprep.subr.bf16.mxu0 0
      %1405 = vmatpush1.bf16.msra.mxu0 0
      %1406 = vmatprep.subr.bf16.mxu0 0
      %1407 = vmatpush1.bf16.msra.mxu0 0
      %1408 = vmatprep.subr.bf16.mxu0 0
      %1409 = vmatpush1.bf16.msra.mxu0 %v1393
      %1410 = vmatprep.subr.bf16.mxu0 0
      %1411 = vmatpush1.bf16.msra.mxu0 %v1155
      %1412 = vmatprep.subr.bf16.mxu0 0
      %1413 = vmatpush1.bf16.msra.mxu0 %v837
      %1414 = vmatprep.subr.bf16.mxu0 0
      %1415 = vmatpush1.bf16.msra.mxu0 %v583
      %1416 = vmatprep.subr.bf16.mxu0 0
      %1417 = vmatpush2.bf16.msra.mxu0 0
      %1418 = vmatprep.subr.bf16.mxu0 0
      %1419 = vmatpush2.bf16.msra.mxu0 0
      %1420 = vmatprep.subr.bf16.mxu0 0
      %1421 = vmatpush2.bf16.msra.mxu0 0
      %1422 = vmatprep.subr.bf16.mxu0 0
      %1423 = vmatpush2.bf16.msra.mxu0 0
      %1424 = vmatprep.subr.bf16.mxu0 0
      %1425 = vmatpush2.bf16.msra.mxu0 0
      %1426 = vmatprep.subr.bf16.mxu0 0
      %1427 = vmatpush2.bf16.msra.mxu0 0
      %1428 = vmatprep.subr.bf16.mxu0 0
      %1429 = vmatpush2.bf16.msra.mxu0 0
      %1430 = vmatprep.subr.bf16.mxu0 0
      %1431 = vmatpush2.bf16.msra.mxu0 0
      %1432 = vmatprep.mubr.bf16.mxu0 0
      %1433 = vmatmul.mubr.bf16.gmra.mxu0 %v1398
      %v1434 = vpop.f32.mrf.mxu0
      %v1435 = vadd.f32 0.0, %v1434
      %v1436 = vpop.f32.mrf.mxu0
      %v1437 = vpop.f32.mrf.mxu0
      %v1438 = vpop.f32.mrf.mxu0
      %1439 = vdwg.mxu0
      %v1440 = vmax.f32 %v1435, 0.0
      %v1441 = vpack.c.bf16 %v1440, %v1440
      %1443 = vrot.lane.b32.xlu0 %v1441, 120
      %v1444 = vpop.permute.xlu0 %1443
      %1446 = vrot.lane.b32.xlu0 %v1441, 112
      %v1447 = vpop.permute.xlu0 %1446
      %1449 = vrot.lane.b32.xlu0 %v1441, 104
      %v1450 = vpop.permute.xlu0 %1449
      %1452 = vrot.lane.b32.xlu0 %v1441, 96
      %v1453 = vpop.permute.xlu0 %1452
      %1455 = vrot.lane.b32.xlu0 %v1441, 88
      %v1456 = vpop.permute.xlu0 %1455
      %1458 = vrot.lane.b32.xlu0 %v1441, 80
      %v1459 = vpop.permute.xlu0 %1458
      %1461 = vrot.lane.b32.xlu0 %v1441, 72
      %v1462 = vpop.permute.xlu0 %1461
      %v1464 = vcombine.low %v1441, %v1453
      %v1466 = vunpack.c.l.s4 1983009808
      %v1467 = vunpack.c.0.s8 %v1466
      %v1468 = vlaneseq
      %v1469 = vshrl.u32 %v1468, 7
      %v1470 = vsub.s32 %v1467, %v1469
      %v1471 = vrot.slane %v1464, %v1470
      %v1472 = vcombine.low %v1447, %v1459
      %v1474 = vunpack.c.l.s4 1983009808
      %v1475 = vunpack.c.0.s8 %v1474
      %v1476 = vlaneseq
      %v1477 = vshrl.u32 %v1476, 7
      %v1478 = vsub.s32 %v1475, %v1477
      %v1479 = vrot.slane %v1472, %v1478
      %v1480 = vcombine.low %v1471, %v1479
      %v1481 = vcombine.high %v1471, %v1479
      %v1483 = vunpack.c.l.s4 1934713408
      %v1484 = vunpack.c.0.s8 %v1483
      %v1485 = vlaneseq
      %v1486 = vshrl.u32 %v1485, 7
      %v1487 = vsub.s32 %v1484, %v1486
      %v1488 = vrot.slane %v1480, %v1487
      %v1490 = vunpack.c.l.s4 1934713408
      %v1491 = vunpack.c.0.s8 %v1490
      %v1492 = vlaneseq
      %v1493 = vshrl.u32 %v1492, 7
      %v1494 = vsub.s32 %v1491, %v1493
      %v1495 = vrot.slane %v1481, %v1494
      %v1496 = vcombine.high %v1488, 0
      %v1497 = vcombine.high %v1495, 0
      %v1498 = vcombine.low %v1444, %v1456
      %v1500 = vunpack.c.l.s4 1983009808
      %v1501 = vunpack.c.0.s8 %v1500
      %v1502 = vlaneseq
      %v1503 = vshrl.u32 %v1502, 7
      %v1504 = vsub.s32 %v1501, %v1503
      %v1505 = vrot.slane %v1498, %v1504
      %v1506 = vcombine.low %v1450, %v1462
      %v1508 = vunpack.c.l.s4 1983009808
      %v1509 = vunpack.c.0.s8 %v1508
      %v1510 = vlaneseq
      %v1511 = vshrl.u32 %v1510, 7
      %v1512 = vsub.s32 %v1509, %v1511
      %v1513 = vrot.slane %v1506, %v1512
      %v1514 = vcombine.low %v1505, %v1513
      %v1515 = vcombine.high %v1505, %v1513
      %v1517 = vunpack.c.l.s4 1934713408
      %v1518 = vunpack.c.0.s8 %v1517
      %v1519 = vlaneseq
      %v1520 = vshrl.u32 %v1519, 7
      %v1521 = vsub.s32 %v1518, %v1520
      %v1522 = vrot.slane %v1514, %v1521
      %v1524 = vunpack.c.l.s4 1934713408
      %v1525 = vunpack.c.0.s8 %v1524
      %v1526 = vlaneseq
      %v1527 = vshrl.u32 %v1526, 7
      %v1528 = vsub.s32 %v1525, %v1527
      %v1529 = vrot.slane %v1515, %v1528
      %v1530 = vcombine.high %v1522, 0
      %v1531 = vcombine.high %v1529, 0
      %v1534 = vpack.i.b16 %v1522, %v1488
      %v1535 = vshrl.u32 %v1488, 16
      %v1536 = vshrl.u32 %v1522, 16
      %v1537 = vpack.i.b16 %v1536, %v1535
      %v1540 = vpack.i.b16 %v1530, %v1496
      %v1541 = vshrl.u32 %v1496, 16
      %v1542 = vshrl.u32 %v1530, 16
      %v1543 = vpack.i.b16 %v1542, %v1541
      %v1546 = vpack.i.b16 %v1529, %v1495
      %v1547 = vshrl.u32 %v1495, 16
      %v1548 = vshrl.u32 %v1529, 16
      %v1549 = vpack.i.b16 %v1548, %v1547
      %v1552 = vpack.i.b16 %v1531, %v1497
      %v1553 = vshrl.u32 %v1497, 16
      %v1554 = vshrl.u32 %v1531, 16
      %v1555 = vpack.i.b16 %v1554, %v1553
      %v1557 = vshrl.u32 %v1534, 16
      %v1559 = vrot.slane %v1557, 7
      %v1560 = vshll.u32 %v1534, 16
      %v1562 = vor.u32 %v1559, %v1560
      %v1564 = vshrl.u32 %v1537, 16
      %v1566 = vrot.slane %v1564, 7
      %v1567 = vshll.u32 %v1537, 16
      %v1569 = vor.u32 %v1566, %v1567
      %v1571 = vshrl.u32 %v1540, 16
      %v1573 = vrot.slane %v1571, 7
      %v1574 = vshll.u32 %v1540, 16
      %v1576 = vor.u32 %v1573, %v1574
      %v1578 = vshrl.u32 %v1543, 16
      %v1580 = vrot.slane %v1578, 7
      %v1581 = vshll.u32 %v1543, 16
      %v1583 = vor.u32 %v1580, %v1581
      %v1585 = vshrl.u32 %v1546, 16
      %v1587 = vrot.slane %v1585, 7
      %v1588 = vshll.u32 %v1546, 16
      %v1590 = vor.u32 %v1587, %v1588
      %v1592 = vshrl.u32 %v1549, 16
      %v1594 = vrot.slane %v1592, 7
      %v1595 = vshll.u32 %v1549, 16
      %v1597 = vor.u32 %v1594, %v1595
      %v1599 = vshrl.u32 %v1552, 16
      %v1601 = vrot.slane %v1599, 7
      %v1602 = vshll.u32 %v1552, 16
      %v1604 = vor.u32 %v1601, %v1602
      %v1606 = vshrl.u32 %v1555, 16
      %v1608 = vrot.slane %v1606, 7
      %v1609 = vshll.u32 %v1555, 16
      %v1611 = vor.u32 %v1608, %v1609
      %vm1620 = vcmask 1040384
      %vm1621 = vsmask.f32 256
      %vm1622 = vmand %vm1620, %vm1621
      %v1623 = vsel %vm1622, 0, %v1562
      %v1624 = vsel %vm1622, 0, %v1569
      %v1625 = vsel %vm1622, 0, %v1576
      %v1626 = vsel %vm1622, 0, %v1583
      %v1627 = vsel %vm1622, 0, %v1590
      %v1628 = vsel %vm1622, 0, %v1597
      %v1629 = vsel %vm1622, 0, %v1604
      %v1630 = vsel %vm1622, 0, %v1611
      %vm1631 = vcmask 1044480
      %vm1632 = vsmask.f32 4352
      %vm1633 = vmand %vm1631, %vm1632
      %v1634 = vsel %vm1633, %v1623, 0
      %v1635 = vsel %vm1633, %v1624, 0
      %v1636 = vsel %vm1633, %v1625, 0
      %v1637 = vsel %vm1633, %v1626, 0
      %v1638 = vsel %vm1633, %v1627, 0
      %v1639 = vsel %vm1633, %v1628, 0
      %v1640 = vsel %vm1633, %v1629, 0
      %v1641 = vsel %vm1633, %v1630, 0
      %1650 = vrot.lane.b32.xlu0 %v1634, 1
      %v1651 = vpop.permute.xlu0 %1650
      %1652 = vrot.lane.b32.xlu0 %v1635, 1
      %v1653 = vpop.permute.xlu0 %1652
      %1654 = vrot.lane.b32.xlu0 %v1636, 1
      %v1655 = vpop.permute.xlu0 %1654
      %1656 = vrot.lane.b32.xlu0 %v1637, 1
      %v1657 = vpop.permute.xlu0 %1656
      %1658 = vrot.lane.b32.xlu0 %v1638, 1
      %v1659 = vpop.permute.xlu0 %1658
      %1660 = vrot.lane.b32.xlu0 %v1639, 1
      %v1661 = vpop.permute.xlu0 %1660
      %1662 = vrot.lane.b32.xlu0 %v1640, 1
      %v1663 = vpop.permute.xlu0 %1662
      %1664 = vrot.lane.b32.xlu0 %v1641, 1
      %v1665 = vpop.permute.xlu0 %1664
      %vm1666 = vcmask 7168
      %v1669 = vsel %vm1666, 0, %v1651
      %v1671 = vsel %vm1666, 0, %v1653
      %v1673 = vsel %vm1666, 0, %v1655
      %v1675 = vsel %vm1666, 0, %v1657
      %v1677 = vsel %vm1666, 0, %v1659
      %v1679 = vsel %vm1666, 0, %v1661
      %v1681 = vsel %vm1666, 0, %v1663
      %v1683 = vsel %vm1666, 0, %v1665
      %vm1684 = vcmask 72704
      %v1685 = vsel %vm1684, %v1669, 0
      %v1687 = vsel %vm1684, %v1671, 0
      %v1689 = vsel %vm1684, %v1673, 0
      %v1691 = vsel %vm1684, %v1675, 0
      %v1693 = vsel %vm1684, %v1677, 0
      %v1695 = vsel %vm1684, %v1679, 0
      %v1697 = vsel %vm1684, %v1681, 0
      %v1699 = vsel %vm1684, %v1683, 0
      %v1701 = vcombine.low %v1685, %v1693
      %v1703 = vunpack.c.l.s4 1983009808
      %v1704 = vunpack.c.0.s8 %v1703
      %v1705 = vlaneseq
      %v1706 = vshrl.u32 %v1705, 7
      %v1707 = vsub.s32 %v1704, %v1706
      %v1708 = vrot.slane %v1701, %v1707
      %v1709 = vcombine.low %v1689, %v1697
      %v1711 = vunpack.c.l.s4 1983009808
      %v1712 = vunpack.c.0.s8 %v1711
      %v1713 = vlaneseq
      %v1714 = vshrl.u32 %v1713, 7
      %v1715 = vsub.s32 %v1712, %v1714
      %v1716 = vrot.slane %v1709, %v1715
      %v1717 = vcombine.low %v1708, %v1716
      %v1718 = vcombine.high %v1708, %v1716
      %v1720 = vunpack.c.l.s4 1934713408
      %v1721 = vunpack.c.0.s8 %v1720
      %v1722 = vlaneseq
      %v1723 = vshrl.u32 %v1722, 7
      %v1724 = vsub.s32 %v1721, %v1723
      %v1725 = vrot.slane %v1717, %v1724
      %v1727 = vunpack.c.l.s4 1934713408
      %v1728 = vunpack.c.0.s8 %v1727
      %v1729 = vlaneseq
      %v1730 = vshrl.u32 %v1729, 7
      %v1731 = vsub.s32 %v1728, %v1730
      %v1732 = vrot.slane %v1718, %v1731
      %v1733 = vcombine.high %v1725, 0
      %v1734 = vcombine.high %v1732, 0
      %v1735 = vcombine.low %v1687, %v1695
      %v1737 = vunpack.c.l.s4 1983009808
      %v1738 = vunpack.c.0.s8 %v1737
      %v1739 = vlaneseq
      %v1740 = vshrl.u32 %v1739, 7
      %v1741 = vsub.s32 %v1738, %v1740
      %v1742 = vrot.slane %v1735, %v1741
      %v1743 = vcombine.low %v1691, %v1699
      %v1745 = vunpack.c.l.s4 1983009808
      %v1746 = vunpack.c.0.s8 %v1745
      %v1747 = vlaneseq
      %v1748 = vshrl.u32 %v1747, 7
      %v1749 = vsub.s32 %v1746, %v1748
      %v1750 = vrot.slane %v1743, %v1749
      %v1751 = vcombine.low %v1742, %v1750
      %v1752 = vcombine.high %v1742, %v1750
      %v1754 = vunpack.c.l.s4 1934713408
      %v1755 = vunpack.c.0.s8 %v1754
      %v1756 = vlaneseq
      %v1757 = vshrl.u32 %v1756, 7
      %v1758 = vsub.s32 %v1755, %v1757
      %v1759 = vrot.slane %v1751, %v1758
      %v1761 = vunpack.c.l.s4 1934713408
      %v1762 = vunpack.c.0.s8 %v1761
      %v1763 = vlaneseq
      %v1764 = vshrl.u32 %v1763, 7
      %v1765 = vsub.s32 %v1762, %v1764
      %v1766 = vrot.slane %v1752, %v1765
      %v1767 = vcombine.high %v1759, 0
      %v1768 = vcombine.high %v1766, 0
      %v1771 = vpack.i.b16 %v1759, %v1725
      %v1772 = vshrl.u32 %v1725, 16
      %v1773 = vshrl.u32 %v1759, 16
      %v1774 = vpack.i.b16 %v1773, %v1772
      %v1777 = vpack.i.b16 %v1767, %v1733
      %v1778 = vshrl.u32 %v1733, 16
      %v1779 = vshrl.u32 %v1767, 16
      %v1780 = vpack.i.b16 %v1779, %v1778
      %v1783 = vpack.i.b16 %v1766, %v1732
      %v1784 = vshrl.u32 %v1732, 16
      %v1785 = vshrl.u32 %v1766, 16
      %v1786 = vpack.i.b16 %v1785, %v1784
      %v1789 = vpack.i.b16 %v1768, %v1734
      %v1790 = vshrl.u32 %v1734, 16
      %v1791 = vshrl.u32 %v1768, 16
      %v1792 = vpack.i.b16 %v1791, %v1790
      %1793 = vrot.lane.b32.xlu0 %v1774, 8
      %v1794 = vpop.permute.xlu0 %1793
      %1795 = vrot.lane.b32.xlu0 %v1777, 16
      %v1796 = vpop.permute.xlu0 %1795
      %1797 = vrot.lane.b32.xlu0 %v1780, 24
      %v1798 = vpop.permute.xlu0 %1797
      %1799 = vrot.lane.b32.xlu0 %v1783, 32
      %v1800 = vpop.permute.xlu0 %1799
      %1801 = vrot.lane.b32.xlu0 %v1786, 40
      %v1802 = vpop.permute.xlu0 %1801
      %1803 = vrot.lane.b32.xlu0 %v1789, 48
      %v1804 = vpop.permute.xlu0 %1803
      %1805 = vrot.lane.b32.xlu0 %v1792, 56
      %v1806 = vpop.permute.xlu0 %1805
      %v1809 = vsel %vm562, %v1771, %v1794
      %v1811 = vsel %vm566, %v1809, %v1796
      %v1813 = vsel %vm569, %v1811, %v1798
      %v1815 = vsel %vm572, %v1813, %v1800
      %v1817 = vsel %vm575, %v1815, %v1802
      %v1819 = vsel %vm578, %v1817, %v1804
      %v1821 = vsel %vm581, %v1819, %v1806
      %1830 = vrot.lane.b32.xlu0 %v1685, 127
      %v1831 = vpop.permute.xlu0 %1830
      %1832 = vrot.lane.b32.xlu0 %v1687, 127
      %v1833 = vpop.permute.xlu0 %1832
      %1834 = vrot.lane.b32.xlu0 %v1689, 127
      %v1835 = vpop.permute.xlu0 %1834
      %1836 = vrot.lane.b32.xlu0 %v1691, 127
      %v1837 = vpop.permute.xlu0 %1836
      %1838 = vrot.lane.b32.xlu0 %v1693, 127
      %v1839 = vpop.permute.xlu0 %1838
      %1840 = vrot.lane.b32.xlu0 %v1695, 127
      %v1841 = vpop.permute.xlu0 %1840
      %1842 = vrot.lane.b32.xlu0 %v1697, 127
      %v1843 = vpop.permute.xlu0 %1842
      %1844 = vrot.lane.b32.xlu0 %v1699, 127
      %v1845 = vpop.permute.xlu0 %1844
      %v1854 = vcombine.low %v1831, %v1839
      %v1856 = vunpack.c.l.s4 1983009808
      %v1857 = vunpack.c.0.s8 %v1856
      %v1858 = vlaneseq
      %v1859 = vshrl.u32 %v1858, 7
      %v1860 = vsub.s32 %v1857, %v1859
      %v1861 = vrot.slane %v1854, %v1860
      %v1862 = vcombine.low %v1835, %v1843
      %v1864 = vunpack.c.l.s4 1983009808
      %v1865 = vunpack.c.0.s8 %v1864
      %v1866 = vlaneseq
      %v1867 = vshrl.u32 %v1866, 7
      %v1868 = vsub.s32 %v1865, %v1867
      %v1869 = vrot.slane %v1862, %v1868
      %v1870 = vcombine.low %v1861, %v1869
      %v1871 = vcombine.high %v1861, %v1869
      %v1873 = vunpack.c.l.s4 1934713408
      %v1874 = vunpack.c.0.s8 %v1873
      %v1875 = vlaneseq
      %v1876 = vshrl.u32 %v1875, 7
      %v1877 = vsub.s32 %v1874, %v1876
      %v1878 = vrot.slane %v1870, %v1877
      %v1880 = vunpack.c.l.s4 1934713408
      %v1881 = vunpack.c.0.s8 %v1880
      %v1882 = vlaneseq
      %v1883 = vshrl.u32 %v1882, 7
      %v1884 = vsub.s32 %v1881, %v1883
      %v1885 = vrot.slane %v1871, %v1884
      %v1886 = vcombine.high %v1878, 0
      %v1887 = vcombine.high %v1885, 0
      %v1888 = vcombine.low %v1833, %v1841
      %v1890 = vunpack.c.l.s4 1983009808
      %v1891 = vunpack.c.0.s8 %v1890
      %v1892 = vlaneseq
      %v1893 = vshrl.u32 %v1892, 7
      %v1894 = vsub.s32 %v1891, %v1893
      %v1895 = vrot.slane %v1888, %v1894
      %v1896 = vcombine.low %v1837, %v1845
      %v1898 = vunpack.c.l.s4 1983009808
      %v1899 = vunpack.c.0.s8 %v1898
      %v1900 = vlaneseq
      %v1901 = vshrl.u32 %v1900, 7
      %v1902 = vsub.s32 %v1899, %v1901
      %v1903 = vrot.slane %v1896, %v1902
      %v1904 = vcombine.low %v1895, %v1903
      %v1905 = vcombine.high %v1895, %v1903
      %v1907 = vunpack.c.l.s4 1934713408
      %v1908 = vunpack.c.0.s8 %v1907
      %v1909 = vlaneseq
      %v1910 = vshrl.u32 %v1909, 7
      %v1911 = vsub.s32 %v1908, %v1910
      %v1912 = vrot.slane %v1904, %v1911
      %v1914 = vunpack.c.l.s4 1934713408
      %v1915 = vunpack.c.0.s8 %v1914
      %v1916 = vlaneseq
      %v1917 = vshrl.u32 %v1916, 7
      %v1918 = vsub.s32 %v1915, %v1917
      %v1919 = vrot.slane %v1905, %v1918
      %v1920 = vcombine.high %v1912, 0
      %v1921 = vcombine.high %v1919, 0
      %v1924 = vpack.i.b16 %v1912, %v1878
      %v1925 = vshrl.u32 %v1878, 16
      %v1926 = vshrl.u32 %v1912, 16
      %v1927 = vpack.i.b16 %v1926, %v1925
      %v1930 = vpack.i.b16 %v1920, %v1886
      %v1931 = vshrl.u32 %v1886, 16
      %v1932 = vshrl.u32 %v1920, 16
      %v1933 = vpack.i.b16 %v1932, %v1931
      %v1936 = vpack.i.b16 %v1919, %v1885
      %v1937 = vshrl.u32 %v1885, 16
      %v1938 = vshrl.u32 %v1919, 16
      %v1939 = vpack.i.b16 %v1938, %v1937
      %v1942 = vpack.i.b16 %v1921, %v1887
      %v1943 = vshrl.u32 %v1887, 16
      %v1944 = vshrl.u32 %v1921, 16
      %v1945 = vpack.i.b16 %v1944, %v1943
      %1946 = vrot.lane.b32.xlu0 %v1927, 8
      %v1947 = vpop.permute.xlu0 %1946
      %1948 = vrot.lane.b32.xlu0 %v1930, 16
      %v1949 = vpop.permute.xlu0 %1948
      %1950 = vrot.lane.b32.xlu0 %v1933, 24
      %v1951 = vpop.permute.xlu0 %1950
      %1952 = vrot.lane.b32.xlu0 %v1936, 32
      %v1953 = vpop.permute.xlu0 %1952
      %1954 = vrot.lane.b32.xlu0 %v1939, 40
      %v1955 = vpop.permute.xlu0 %1954
      %1956 = vrot.lane.b32.xlu0 %v1942, 48
      %v1957 = vpop.permute.xlu0 %1956
      %1958 = vrot.lane.b32.xlu0 %v1945, 56
      %v1959 = vpop.permute.xlu0 %1958
      %v1962 = vsel %vm562, %v1924, %v1947
      %v1964 = vsel %vm566, %v1962, %v1949
      %v1966 = vsel %vm569, %v1964, %v1951
      %v1968 = vsel %vm572, %v1966, %v1953
      %v1970 = vsel %vm575, %v1968, %v1955
      %v1972 = vsel %vm578, %v1970, %v1957
      %v1974 = vsel %vm581, %v1972, %v1959
      %1975 = vrot.lane.b32.xlu0 %v1685, 126
      %v1976 = vpop.permute.xlu0 %1975
      %1977 = vrot.lane.b32.xlu0 %v1687, 126
      %v1978 = vpop.permute.xlu0 %1977
      %1979 = vrot.lane.b32.xlu0 %v1689, 126
      %v1980 = vpop.permute.xlu0 %1979
      %1981 = vrot.lane.b32.xlu0 %v1691, 126
      %v1982 = vpop.permute.xlu0 %1981
      %1983 = vrot.lane.b32.xlu0 %v1693, 126
      %v1984 = vpop.permute.xlu0 %1983
      %1985 = vrot.lane.b32.xlu0 %v1695, 126
      %v1986 = vpop.permute.xlu0 %1985
      %1987 = vrot.lane.b32.xlu0 %v1697, 126
      %v1988 = vpop.permute.xlu0 %1987
      %1989 = vrot.lane.b32.xlu0 %v1699, 126
      %v1990 = vpop.permute.xlu0 %1989
      %v1999 = vcombine.low %v1976, %v1984
      %v2001 = vunpack.c.l.s4 1983009808
      %v2002 = vunpack.c.0.s8 %v2001
      %v2003 = vlaneseq
      %v2004 = vshrl.u32 %v2003, 7
      %v2005 = vsub.s32 %v2002, %v2004
      %v2006 = vrot.slane %v1999, %v2005
      %v2007 = vcombine.low %v1980, %v1988
      %v2009 = vunpack.c.l.s4 1983009808
      %v2010 = vunpack.c.0.s8 %v2009
      %v2011 = vlaneseq
      %v2012 = vshrl.u32 %v2011, 7
      %v2013 = vsub.s32 %v2010, %v2012
      %v2014 = vrot.slane %v2007, %v2013
      %v2015 = vcombine.low %v2006, %v2014
      %v2016 = vcombine.high %v2006, %v2014
      %v2018 = vunpack.c.l.s4 1934713408
      %v2019 = vunpack.c.0.s8 %v2018
      %v2020 = vlaneseq
      %v2021 = vshrl.u32 %v2020, 7
      %v2022 = vsub.s32 %v2019, %v2021
      %v2023 = vrot.slane %v2015, %v2022
      %v2025 = vunpack.c.l.s4 1934713408
      %v2026 = vunpack.c.0.s8 %v2025
      %v2027 = vlaneseq
      %v2028 = vshrl.u32 %v2027, 7
      %v2029 = vsub.s32 %v2026, %v2028
      %v2030 = vrot.slane %v2016, %v2029
      %v2031 = vcombine.high %v2023, 0
      %v2032 = vcombine.high %v2030, 0
      %v2033 = vcombine.low %v1978, %v1986
      %v2035 = vunpack.c.l.s4 1983009808
      %v2036 = vunpack.c.0.s8 %v2035
      %v2037 = vlaneseq
      %v2038 = vshrl.u32 %v2037, 7
      %v2039 = vsub.s32 %v2036, %v2038
      %v2040 = vrot.slane %v2033, %v2039
      %v2041 = vcombine.low %v1982, %v1990
      %v2043 = vunpack.c.l.s4 1983009808
      %v2044 = vunpack.c.0.s8 %v2043
      %v2045 = vlaneseq
      %v2046 = vshrl.u32 %v2045, 7
      %v2047 = vsub.s32 %v2044, %v2046
      %v2048 = vrot.slane %v2041, %v2047
      %v2049 = vcombine.low %v2040, %v2048
      %v2050 = vcombine.high %v2040, %v2048
      %v2052 = vunpack.c.l.s4 1934713408
      %v2053 = vunpack.c.0.s8 %v2052
      %v2054 = vlaneseq
      %v2055 = vshrl.u32 %v2054, 7
      %v2056 = vsub.s32 %v2053, %v2055
      %v2057 = vrot.slane %v2049, %v2056
      %v2059 = vunpack.c.l.s4 1934713408
      %v2060 = vunpack.c.0.s8 %v2059
      %v2061 = vlaneseq
      %v2062 = vshrl.u32 %v2061, 7
      %v2063 = vsub.s32 %v2060, %v2062
      %v2064 = vrot.slane %v2050, %v2063
      %v2065 = vcombine.high %v2057, 0
      %v2066 = vcombine.high %v2064, 0
      %v2069 = vpack.i.b16 %v2057, %v2023
      %v2070 = vshrl.u32 %v2023, 16
      %v2071 = vshrl.u32 %v2057, 16
      %v2072 = vpack.i.b16 %v2071, %v2070
      %v2075 = vpack.i.b16 %v2065, %v2031
      %v2076 = vshrl.u32 %v2031, 16
      %v2077 = vshrl.u32 %v2065, 16
      %v2078 = vpack.i.b16 %v2077, %v2076
      %v2081 = vpack.i.b16 %v2064, %v2030
      %v2082 = vshrl.u32 %v2030, 16
      %v2083 = vshrl.u32 %v2064, 16
      %v2084 = vpack.i.b16 %v2083, %v2082
      %v2087 = vpack.i.b16 %v2066, %v2032
      %v2088 = vshrl.u32 %v2032, 16
      %v2089 = vshrl.u32 %v2066, 16
      %v2090 = vpack.i.b16 %v2089, %v2088
      %2091 = vrot.lane.b32.xlu0 %v2072, 8
      %v2092 = vpop.permute.xlu0 %2091
      %2093 = vrot.lane.b32.xlu0 %v2075, 16
      %v2094 = vpop.permute.xlu0 %2093
      %2095 = vrot.lane.b32.xlu0 %v2078, 24
      %v2096 = vpop.permute.xlu0 %2095
      %2097 = vrot.lane.b32.xlu0 %v2081, 32
      %v2098 = vpop.permute.xlu0 %2097
      %2099 = vrot.lane.b32.xlu0 %v2084, 40
      %v2100 = vpop.permute.xlu0 %2099
      %2101 = vrot.lane.b32.xlu0 %v2087, 48
      %v2102 = vpop.permute.xlu0 %2101
      %2103 = vrot.lane.b32.xlu0 %v2090, 56
      %v2104 = vpop.permute.xlu0 %2103
      %v2107 = vsel %vm562, %v2069, %v2092
      %v2109 = vsel %vm566, %v2107, %v2094
      %v2111 = vsel %vm569, %v2109, %v2096
      %v2113 = vsel %vm572, %v2111, %v2098
      %v2115 = vsel %vm575, %v2113, %v2100
      %v2117 = vsel %vm578, %v2115, %v2102
      %v2119 = vsel %vm581, %v2117, %v2104
      %v2120 = vshrl.u32 %v1685, 16
      %v2122 = vshll.u32 %v1685, 16
      %v2124 = vrot.slane %v2122, 1
      %v2125 = vor.u32 %v2120, %v2124
      %v2126 = vshrl.u32 %v1687, 16
      %v2128 = vshll.u32 %v1687, 16
      %v2130 = vrot.slane %v2128, 1
      %v2131 = vor.u32 %v2126, %v2130
      %v2132 = vshrl.u32 %v1689, 16
      %v2134 = vshll.u32 %v1689, 16
      %v2136 = vrot.slane %v2134, 1
      %v2137 = vor.u32 %v2132, %v2136
      %v2138 = vshrl.u32 %v1691, 16
      %v2140 = vshll.u32 %v1691, 16
      %v2142 = vrot.slane %v2140, 1
      %v2143 = vor.u32 %v2138, %v2142
      %v2144 = vshrl.u32 %v1693, 16
      %v2146 = vshll.u32 %v1693, 16
      %v2148 = vrot.slane %v2146, 1
      %v2149 = vor.u32 %v2144, %v2148
      %v2150 = vshrl.u32 %v1695, 16
      %v2152 = vshll.u32 %v1695, 16
      %v2154 = vrot.slane %v2152, 1
      %v2155 = vor.u32 %v2150, %v2154
      %v2156 = vshrl.u32 %v1697, 16
      %v2158 = vshll.u32 %v1697, 16
      %v2160 = vrot.slane %v2158, 1
      %v2161 = vor.u32 %v2156, %v2160
      %v2162 = vshrl.u32 %v1699, 16
      %v2164 = vshll.u32 %v1699, 16
      %v2166 = vrot.slane %v2164, 1
      %v2167 = vor.u32 %v2162, %v2166
      %v2176 = vcombine.low %v2125, %v2149
      %v2178 = vunpack.c.l.s4 1983009808
      %v2179 = vunpack.c.0.s8 %v2178
      %v2180 = vlaneseq
      %v2181 = vshrl.u32 %v2180, 7
      %v2182 = vsub.s32 %v2179, %v2181
      %v2183 = vrot.slane %v2176, %v2182
      %v2184 = vcombine.low %v2137, %v2161
      %v2186 = vunpack.c.l.s4 1983009808
      %v2187 = vunpack.c.0.s8 %v2186
      %v2188 = vlaneseq
      %v2189 = vshrl.u32 %v2188, 7
      %v2190 = vsub.s32 %v2187, %v2189
      %v2191 = vrot.slane %v2184, %v2190
      %v2192 = vcombine.low %v2183, %v2191
      %v2193 = vcombine.high %v2183, %v2191
      %v2195 = vunpack.c.l.s4 1934713408
      %v2196 = vunpack.c.0.s8 %v2195
      %v2197 = vlaneseq
      %v2198 = vshrl.u32 %v2197, 7
      %v2199 = vsub.s32 %v2196, %v2198
      %v2200 = vrot.slane %v2192, %v2199
      %v2202 = vunpack.c.l.s4 1934713408
      %v2203 = vunpack.c.0.s8 %v2202
      %v2204 = vlaneseq
      %v2205 = vshrl.u32 %v2204, 7
      %v2206 = vsub.s32 %v2203, %v2205
      %v2207 = vrot.slane %v2193, %v2206
      %v2208 = vcombine.high %v2200, 0
      %v2209 = vcombine.high %v2207, 0
      %v2210 = vcombine.low %v2131, %v2155
      %v2212 = vunpack.c.l.s4 1983009808
      %v2213 = vunpack.c.0.s8 %v2212
      %v2214 = vlaneseq
      %v2215 = vshrl.u32 %v2214, 7
      %v2216 = vsub.s32 %v2213, %v2215
      %v2217 = vrot.slane %v2210, %v2216
      %v2218 = vcombine.low %v2143, %v2167
      %v2220 = vunpack.c.l.s4 1983009808
      %v2221 = vunpack.c.0.s8 %v2220
      %v2222 = vlaneseq
      %v2223 = vshrl.u32 %v2222, 7
      %v2224 = vsub.s32 %v2221, %v2223
      %v2225 = vrot.slane %v2218, %v2224
      %v2226 = vcombine.low %v2217, %v2225
      %v2227 = vcombine.high %v2217, %v2225
      %v2229 = vunpack.c.l.s4 1934713408
      %v2230 = vunpack.c.0.s8 %v2229
      %v2231 = vlaneseq
      %v2232 = vshrl.u32 %v2231, 7
      %v2233 = vsub.s32 %v2230, %v2232
      %v2234 = vrot.slane %v2226, %v2233
      %v2236 = vunpack.c.l.s4 1934713408
      %v2237 = vunpack.c.0.s8 %v2236
      %v2238 = vlaneseq
      %v2239 = vshrl.u32 %v2238, 7
      %v2240 = vsub.s32 %v2237, %v2239
      %v2241 = vrot.slane %v2227, %v2240
      %v2242 = vcombine.high %v2234, 0
      %v2243 = vcombine.high %v2241, 0
      %v2246 = vpack.i.b16 %v2234, %v2200
      %v2247 = vshrl.u32 %v2200, 16
      %v2248 = vshrl.u32 %v2234, 16
      %v2249 = vpack.i.b16 %v2248, %v2247
      %v2252 = vpack.i.b16 %v2242, %v2208
      %v2253 = vshrl.u32 %v2208, 16
      %v2254 = vshrl.u32 %v2242, 16
      %v2255 = vpack.i.b16 %v2254, %v2253
      %v2258 = vpack.i.b16 %v2241, %v2207
      %v2259 = vshrl.u32 %v2207, 16
      %v2260 = vshrl.u32 %v2241, 16
      %v2261 = vpack.i.b16 %v2260, %v2259
      %v2264 = vpack.i.b16 %v2243, %v2209
      %v2265 = vshrl.u32 %v2209, 16
      %v2266 = vshrl.u32 %v2243, 16
      %v2267 = vpack.i.b16 %v2266, %v2265
      %2268 = vrot.lane.b32.xlu0 %v2249, 8
      %v2269 = vpop.permute.xlu0 %2268
      %2270 = vrot.lane.b32.xlu0 %v2252, 16
      %v2271 = vpop.permute.xlu0 %2270
      %2272 = vrot.lane.b32.xlu0 %v2255, 24
      %v2273 = vpop.permute.xlu0 %2272
      %2274 = vrot.lane.b32.xlu0 %v2258, 32
      %v2275 = vpop.permute.xlu0 %2274
      %2276 = vrot.lane.b32.xlu0 %v2261, 40
      %v2277 = vpop.permute.xlu0 %2276
      %2278 = vrot.lane.b32.xlu0 %v2264, 48
      %v2279 = vpop.permute.xlu0 %2278
      %2280 = vrot.lane.b32.xlu0 %v2267, 56
      %v2281 = vpop.permute.xlu0 %2280
      %v2284 = vsel %vm562, %v2246, %v2269
      %v2286 = vsel %vm566, %v2284, %v2271
      %v2288 = vsel %vm569, %v2286, %v2273
      %v2290 = vsel %vm572, %v2288, %v2275
      %v2292 = vsel %vm575, %v2290, %v2277
      %v2294 = vsel %vm578, %v2292, %v2279
      %v2296 = vsel %vm581, %v2294, %v2281
      %2297 = vrot.lane.b32.xlu0 %v2125, 127
      %v2298 = vpop.permute.xlu0 %2297
      %2299 = vrot.lane.b32.xlu0 %v2131, 127
      %v2300 = vpop.permute.xlu0 %2299
      %2301 = vrot.lane.b32.xlu0 %v2137, 127
      %v2302 = vpop.permute.xlu0 %2301
      %2303 = vrot.lane.b32.xlu0 %v2143, 127
      %v2304 = vpop.permute.xlu0 %2303
      %2305 = vrot.lane.b32.xlu0 %v2149, 127
      %v2306 = vpop.permute.xlu0 %2305
      %2307 = vrot.lane.b32.xlu0 %v2155, 127
      %v2308 = vpop.permute.xlu0 %2307
      %2309 = vrot.lane.b32.xlu0 %v2161, 127
      %v2310 = vpop.permute.xlu0 %2309
      %2311 = vrot.lane.b32.xlu0 %v2167, 127
      %v2312 = vpop.permute.xlu0 %2311
      %v2321 = vcombine.low %v2298, %v2306
      %v2323 = vunpack.c.l.s4 1983009808
      %v2324 = vunpack.c.0.s8 %v2323
      %v2325 = vlaneseq
      %v2326 = vshrl.u32 %v2325, 7
      %v2327 = vsub.s32 %v2324, %v2326
      %v2328 = vrot.slane %v2321, %v2327
      %v2329 = vcombine.low %v2302, %v2310
      %v2331 = vunpack.c.l.s4 1983009808
      %v2332 = vunpack.c.0.s8 %v2331
      %v2333 = vlaneseq
      %v2334 = vshrl.u32 %v2333, 7
      %v2335 = vsub.s32 %v2332, %v2334
      %v2336 = vrot.slane %v2329, %v2335
      %v2337 = vcombine.low %v2328, %v2336
      %v2338 = vcombine.high %v2328, %v2336
      %v2340 = vunpack.c.l.s4 1934713408
      %v2341 = vunpack.c.0.s8 %v2340
      %v2342 = vlaneseq
      %v2343 = vshrl.u32 %v2342, 7
      %v2344 = vsub.s32 %v2341, %v2343
      %v2345 = vrot.slane %v2337, %v2344
      %v2347 = vunpack.c.l.s4 1934713408
      %v2348 = vunpack.c.0.s8 %v2347
      %v2349 = vlaneseq
      %v2350 = vshrl.u32 %v2349, 7
      %v2351 = vsub.s32 %v2348, %v2350
      %v2352 = vrot.slane %v2338, %v2351
      %v2353 = vcombine.high %v2345, 0
      %v2354 = vcombine.high %v2352, 0
      %v2355 = vcombine.low %v2300, %v2308
      %v2357 = vunpack.c.l.s4 1983009808
      %v2358 = vunpack.c.0.s8 %v2357
      %v2359 = vlaneseq
      %v2360 = vshrl.u32 %v2359, 7
      %v2361 = vsub.s32 %v2358, %v2360
      %v2362 = vrot.slane %v2355, %v2361
      %v2363 = vcombine.low %v2304, %v2312
      %v2365 = vunpack.c.l.s4 1983009808
      %v2366 = vunpack.c.0.s8 %v2365
      %v2367 = vlaneseq
      %v2368 = vshrl.u32 %v2367, 7
      %v2369 = vsub.s32 %v2366, %v2368
      %v2370 = vrot.slane %v2363, %v2369
      %v2371 = vcombine.low %v2362, %v2370
      %v2372 = vcombine.high %v2362, %v2370
      %v2374 = vunpack.c.l.s4 1934713408
      %v2375 = vunpack.c.0.s8 %v2374
      %v2376 = vlaneseq
      %v2377 = vshrl.u32 %v2376, 7
      %v2378 = vsub.s32 %v2375, %v2377
      %v2379 = vrot.slane %v2371, %v2378
      %v2381 = vunpack.c.l.s4 1934713408
      %v2382 = vunpack.c.0.s8 %v2381
      %v2383 = vlaneseq
      %v2384 = vshrl.u32 %v2383, 7
      %v2385 = vsub.s32 %v2382, %v2384
      %v2386 = vrot.slane %v2372, %v2385
      %v2387 = vcombine.high %v2379, 0
      %v2388 = vcombine.high %v2386, 0
      %v2391 = vpack.i.b16 %v2379, %v2345
      %v2392 = vshrl.u32 %v2345, 16
      %v2393 = vshrl.u32 %v2379, 16
      %v2394 = vpack.i.b16 %v2393, %v2392
      %v2397 = vpack.i.b16 %v2387, %v2353
      %v2398 = vshrl.u32 %v2353, 16
      %v2399 = vshrl.u32 %v2387, 16
      %v2400 = vpack.i.b16 %v2399, %v2398
      %v2403 = vpack.i.b16 %v2386, %v2352
      %v2404 = vshrl.u32 %v2352, 16
      %v2405 = vshrl.u32 %v2386, 16
      %v2406 = vpack.i.b16 %v2405, %v2404
      %v2409 = vpack.i.b16 %v2388, %v2354
      %v2410 = vshrl.u32 %v2354, 16
      %v2411 = vshrl.u32 %v2388, 16
      %v2412 = vpack.i.b16 %v2411, %v2410
      %2413 = vrot.lane.b32.xlu0 %v2394, 8
      %v2414 = vpop.permute.xlu0 %2413
      %2415 = vrot.lane.b32.xlu0 %v2397, 16
      %v2416 = vpop.permute.xlu0 %2415
      %2417 = vrot.lane.b32.xlu0 %v2400, 24
      %v2418 = vpop.permute.xlu0 %2417
      %2419 = vrot.lane.b32.xlu0 %v2403, 32
      %v2420 = vpop.permute.xlu0 %2419
      %2421 = vrot.lane.b32.xlu0 %v2406, 40
      %v2422 = vpop.permute.xlu0 %2421
      %2423 = vrot.lane.b32.xlu0 %v2409, 48
      %v2424 = vpop.permute.xlu0 %2423
      %2425 = vrot.lane.b32.xlu0 %v2412, 56
      %v2426 = vpop.permute.xlu0 %2425
      %v2429 = vsel %vm562, %v2391, %v2414
      %v2431 = vsel %vm566, %v2429, %v2416
      %v2433 = vsel %vm569, %v2431, %v2418
      %v2435 = vsel %vm572, %v2433, %v2420
      %v2437 = vsel %vm575, %v2435, %v2422
      %v2439 = vsel %vm578, %v2437, %v2424
      %v2441 = vsel %vm581, %v2439, %v2426
      %2442 = vrot.lane.b32.xlu0 %v2125, 126
      %v2443 = vpop.permute.xlu0 %2442
      %2444 = vrot.lane.b32.xlu0 %v2131, 126
      %v2445 = vpop.permute.xlu0 %2444
      %2446 = vrot.lane.b32.xlu0 %v2137, 126
      %v2447 = vpop.permute.xlu0 %2446
      %2448 = vrot.lane.b32.xlu0 %v2143, 126
      %v2449 = vpop.permute.xlu0 %2448
      %2450 = vrot.lane.b32.xlu0 %v2149, 126
      %v2451 = vpop.permute.xlu0 %2450
      %2452 = vrot.lane.b32.xlu0 %v2155, 126
      %v2453 = vpop.permute.xlu0 %2452
      %2454 = vrot.lane.b32.xlu0 %v2161, 126
      %v2455 = vpop.permute.xlu0 %2454
      %2456 = vrot.lane.b32.xlu0 %v2167, 126
      %v2457 = vpop.permute.xlu0 %2456
      %v2466 = vcombine.low %v2443, %v2451
      %v2468 = vunpack.c.l.s4 1983009808
      %v2469 = vunpack.c.0.s8 %v2468
      %v2470 = vlaneseq
      %v2471 = vshrl.u32 %v2470, 7
      %v2472 = vsub.s32 %v2469, %v2471
      %v2473 = vrot.slane %v2466, %v2472
      %v2474 = vcombine.low %v2447, %v2455
      %v2476 = vunpack.c.l.s4 1983009808
      %v2477 = vunpack.c.0.s8 %v2476
      %v2478 = vlaneseq
      %v2479 = vshrl.u32 %v2478, 7
      %v2480 = vsub.s32 %v2477, %v2479
      %v2481 = vrot.slane %v2474, %v2480
      %v2482 = vcombine.low %v2473, %v2481
      %v2483 = vcombine.high %v2473, %v2481
      %v2485 = vunpack.c.l.s4 1934713408
      %v2486 = vunpack.c.0.s8 %v2485
      %v2487 = vlaneseq
      %v2488 = vshrl.u32 %v2487, 7
      %v2489 = vsub.s32 %v2486, %v2488
      %v2490 = vrot.slane %v2482, %v2489
      %v2492 = vunpack.c.l.s4 1934713408
      %v2493 = vunpack.c.0.s8 %v2492
      %v2494 = vlaneseq
      %v2495 = vshrl.u32 %v2494, 7
      %v2496 = vsub.s32 %v2493, %v2495
      %v2497 = vrot.slane %v2483, %v2496
      %v2498 = vcombine.high %v2490, 0
      %v2499 = vcombine.high %v2497, 0
      %v2500 = vcombine.low %v2445, %v2453
      %v2502 = vunpack.c.l.s4 1983009808
      %v2503 = vunpack.c.0.s8 %v2502
      %v2504 = vlaneseq
      %v2505 = vshrl.u32 %v2504, 7
      %v2506 = vsub.s32 %v2503, %v2505
      %v2507 = vrot.slane %v2500, %v2506
      %v2508 = vcombine.low %v2449, %v2457
      %v2510 = vunpack.c.l.s4 1983009808
      %v2511 = vunpack.c.0.s8 %v2510
      %v2512 = vlaneseq
      %v2513 = vshrl.u32 %v2512, 7
      %v2514 = vsub.s32 %v2511, %v2513
      %v2515 = vrot.slane %v2508, %v2514
      %v2516 = vcombine.low %v2507, %v2515
      %v2517 = vcombine.high %v2507, %v2515
      %v2519 = vunpack.c.l.s4 1934713408
      %v2520 = vunpack.c.0.s8 %v2519
      %v2521 = vlaneseq
      %v2522 = vshrl.u32 %v2521, 7
      %v2523 = vsub.s32 %v2520, %v2522
      %v2524 = vrot.slane %v2516, %v2523
      %v2526 = vunpack.c.l.s4 1934713408
      %v2527 = vunpack.c.0.s8 %v2526
      %v2528 = vlaneseq
      %v2529 = vshrl.u32 %v2528, 7
      %v2530 = vsub.s32 %v2527, %v2529
      %v2531 = vrot.slane %v2517, %v2530
      %v2532 = vcombine.high %v2524, 0
      %v2533 = vcombine.high %v2531, 0
      %v2536 = vpack.i.b16 %v2524, %v2490
      %v2537 = vshrl.u32 %v2490, 16
      %v2538 = vshrl.u32 %v2524, 16
      %v2539 = vpack.i.b16 %v2538, %v2537
      %v2542 = vpack.i.b16 %v2532, %v2498
      %v2543 = vshrl.u32 %v2498, 16
      %v2544 = vshrl.u32 %v2532, 16
      %v2545 = vpack.i.b16 %v2544, %v2543
      %v2548 = vpack.i.b16 %v2531, %v2497
      %v2549 = vshrl.u32 %v2497, 16
      %v2550 = vshrl.u32 %v2531, 16
      %v2551 = vpack.i.b16 %v2550, %v2549
      %v2554 = vpack.i.b16 %v2533, %v2499
      %v2555 = vshrl.u32 %v2499, 16
      %v2556 = vshrl.u32 %v2533, 16
      %v2557 = vpack.i.b16 %v2556, %v2555
      %2558 = vrot.lane.b32.xlu0 %v2539, 8
      %v2559 = vpop.permute.xlu0 %2558
      %2560 = vrot.lane.b32.xlu0 %v2542, 16
      %v2561 = vpop.permute.xlu0 %2560
      %2562 = vrot.lane.b32.xlu0 %v2545, 24
      %v2563 = vpop.permute.xlu0 %2562
      %2564 = vrot.lane.b32.xlu0 %v2548, 32
      %v2565 = vpop.permute.xlu0 %2564
      %2566 = vrot.lane.b32.xlu0 %v2551, 40
      %v2567 = vpop.permute.xlu0 %2566
      %2568 = vrot.lane.b32.xlu0 %v2554, 48
      %v2569 = vpop.permute.xlu0 %2568
      %2570 = vrot.lane.b32.xlu0 %v2557, 56
      %v2571 = vpop.permute.xlu0 %2570
      %v2574 = vsel %vm562, %v2536, %v2559
      %v2576 = vsel %vm566, %v2574, %v2561
      %v2578 = vsel %vm569, %v2576, %v2563
      %v2580 = vsel %vm572, %v2578, %v2565
      %v2582 = vsel %vm575, %v2580, %v2567
      %v2584 = vsel %vm578, %v2582, %v2569
      %v2586 = vsel %vm581, %v2584, %v2571
      %v2587 = vrot.slane %v1685, 1
      %v2588 = vrot.slane %v1687, 1
      %v2589 = vrot.slane %v1689, 1
      %v2590 = vrot.slane %v1691, 1
      %v2591 = vrot.slane %v1693, 1
      %v2592 = vrot.slane %v1695, 1
      %v2593 = vrot.slane %v1697, 1
      %v2594 = vrot.slane %v1699, 1
      %v2603 = vcombine.low %v2587, %v2591
      %v2605 = vunpack.c.l.s4 1983009808
      %v2606 = vunpack.c.0.s8 %v2605
      %v2607 = vlaneseq
      %v2608 = vshrl.u32 %v2607, 7
      %v2609 = vsub.s32 %v2606, %v2608
      %v2610 = vrot.slane %v2603, %v2609
      %v2611 = vcombine.low %v2589, %v2593
      %v2613 = vunpack.c.l.s4 1983009808
      %v2614 = vunpack.c.0.s8 %v2613
      %v2615 = vlaneseq
      %v2616 = vshrl.u32 %v2615, 7
      %v2617 = vsub.s32 %v2614, %v2616
      %v2618 = vrot.slane %v2611, %v2617
      %v2619 = vcombine.low %v2610, %v2618
      %v2620 = vcombine.high %v2610, %v2618
      %v2622 = vunpack.c.l.s4 1934713408
      %v2623 = vunpack.c.0.s8 %v2622
      %v2624 = vlaneseq
      %v2625 = vshrl.u32 %v2624, 7
      %v2626 = vsub.s32 %v2623, %v2625
      %v2627 = vrot.slane %v2619, %v2626
      %v2629 = vunpack.c.l.s4 1934713408
      %v2630 = vunpack.c.0.s8 %v2629
      %v2631 = vlaneseq
      %v2632 = vshrl.u32 %v2631, 7
      %v2633 = vsub.s32 %v2630, %v2632
      %v2634 = vrot.slane %v2620, %v2633
      %v2635 = vcombine.high %v2627, 0
      %v2636 = vcombine.high %v2634, 0
      %v2637 = vcombine.low %v2588, %v2592
      %v2639 = vunpack.c.l.s4 1983009808
      %v2640 = vunpack.c.0.s8 %v2639
      %v2641 = vlaneseq
      %v2642 = vshrl.u32 %v2641, 7
      %v2643 = vsub.s32 %v2640, %v2642
      %v2644 = vrot.slane %v2637, %v2643
      %v2645 = vcombine.low %v2590, %v2594
      %v2647 = vunpack.c.l.s4 1983009808
      %v2648 = vunpack.c.0.s8 %v2647
      %v2649 = vlaneseq
      %v2650 = vshrl.u32 %v2649, 7
      %v2651 = vsub.s32 %v2648, %v2650
      %v2652 = vrot.slane %v2645, %v2651
      %v2653 = vcombine.low %v2644, %v2652
      %v2654 = vcombine.high %v2644, %v2652
      %v2656 = vunpack.c.l.s4 1934713408
      %v2657 = vunpack.c.0.s8 %v2656
      %v2658 = vlaneseq
      %v2659 = vshrl.u32 %v2658, 7
      %v2660 = vsub.s32 %v2657, %v2659
      %v2661 = vrot.slane %v2653, %v2660
      %v2663 = vunpack.c.l.s4 1934713408
      %v2664 = vunpack.c.0.s8 %v2663
      %v2665 = vlaneseq
      %v2666 = vshrl.u32 %v2665, 7
      %v2667 = vsub.s32 %v2664, %v2666
      %v2668 = vrot.slane %v2654, %v2667
      %v2669 = vcombine.high %v2661, 0
      %v2670 = vcombine.high %v2668, 0
      %v2673 = vpack.i.b16 %v2661, %v2627
      %v2674 = vshrl.u32 %v2627, 16
      %v2675 = vshrl.u32 %v2661, 16
      %v2676 = vpack.i.b16 %v2675, %v2674
      %v2679 = vpack.i.b16 %v2669, %v2635
      %v2680 = vshrl.u32 %v2635, 16
      %v2681 = vshrl.u32 %v2669, 16
      %v2682 = vpack.i.b16 %v2681, %v2680
      %v2685 = vpack.i.b16 %v2668, %v2634
      %v2686 = vshrl.u32 %v2634, 16
      %v2687 = vshrl.u32 %v2668, 16
      %v2688 = vpack.i.b16 %v2687, %v2686
      %v2691 = vpack.i.b16 %v2670, %v2636
      %v2692 = vshrl.u32 %v2636, 16
      %v2693 = vshrl.u32 %v2670, 16
      %v2694 = vpack.i.b16 %v2693, %v2692
      %2695 = vrot.lane.b32.xlu0 %v2676, 8
      %v2696 = vpop.permute.xlu0 %2695
      %2697 = vrot.lane.b32.xlu0 %v2679, 16
      %v2698 = vpop.permute.xlu0 %2697
      %2699 = vrot.lane.b32.xlu0 %v2682, 24
      %v2700 = vpop.permute.xlu0 %2699
      %2701 = vrot.lane.b32.xlu0 %v2685, 32
      %v2702 = vpop.permute.xlu0 %2701
      %2703 = vrot.lane.b32.xlu0 %v2688, 40
      %v2704 = vpop.permute.xlu0 %2703
      %2705 = vrot.lane.b32.xlu0 %v2691, 48
      %v2706 = vpop.permute.xlu0 %2705
      %2707 = vrot.lane.b32.xlu0 %v2694, 56
      %v2708 = vpop.permute.xlu0 %2707
      %v2711 = vsel %vm562, %v2673, %v2696
      %v2713 = vsel %vm566, %v2711, %v2698
      %v2715 = vsel %vm569, %v2713, %v2700
      %v2717 = vsel %vm572, %v2715, %v2702
      %v2719 = vsel %vm575, %v2717, %v2704
      %v2721 = vsel %vm578, %v2719, %v2706
      %v2723 = vsel %vm581, %v2721, %v2708
      %2724 = vrot.lane.b32.xlu0 %v2587, 127
      %v2725 = vpop.permute.xlu0 %2724
      %2726 = vrot.lane.b32.xlu0 %v2588, 127
      %v2727 = vpop.permute.xlu0 %2726
      %2728 = vrot.lane.b32.xlu0 %v2589, 127
      %v2729 = vpop.permute.xlu0 %2728
      %2730 = vrot.lane.b32.xlu0 %v2590, 127
      %v2731 = vpop.permute.xlu0 %2730
      %2732 = vrot.lane.b32.xlu0 %v2591, 127
      %v2733 = vpop.permute.xlu0 %2732
      %2734 = vrot.lane.b32.xlu0 %v2592, 127
      %v2735 = vpop.permute.xlu0 %2734
      %2736 = vrot.lane.b32.xlu0 %v2593, 127
      %v2737 = vpop.permute.xlu0 %2736
      %2738 = vrot.lane.b32.xlu0 %v2594, 127
      %v2739 = vpop.permute.xlu0 %2738
      %v2748 = vcombine.low %v2725, %v2733
      %v2750 = vunpack.c.l.s4 1983009808
      %v2751 = vunpack.c.0.s8 %v2750
      %v2752 = vlaneseq
      %v2753 = vshrl.u32 %v2752, 7
      %v2754 = vsub.s32 %v2751, %v2753
      %v2755 = vrot.slane %v2748, %v2754
      %v2756 = vcombine.low %v2729, %v2737
      %v2758 = vunpack.c.l.s4 1983009808
      %v2759 = vunpack.c.0.s8 %v2758
      %v2760 = vlaneseq
      %v2761 = vshrl.u32 %v2760, 7
      %v2762 = vsub.s32 %v2759, %v2761
      %v2763 = vrot.slane %v2756, %v2762
      %v2764 = vcombine.low %v2755, %v2763
      %v2765 = vcombine.high %v2755, %v2763
      %v2767 = vunpack.c.l.s4 1934713408
      %v2768 = vunpack.c.0.s8 %v2767
      %v2769 = vlaneseq
      %v2770 = vshrl.u32 %v2769, 7
      %v2771 = vsub.s32 %v2768, %v2770
      %v2772 = vrot.slane %v2764, %v2771
      %v2774 = vunpack.c.l.s4 1934713408
      %v2775 = vunpack.c.0.s8 %v2774
      %v2776 = vlaneseq
      %v2777 = vshrl.u32 %v2776, 7
      %v2778 = vsub.s32 %v2775, %v2777
      %v2779 = vrot.slane %v2765, %v2778
      %v2780 = vcombine.high %v2772, 0
      %v2781 = vcombine.high %v2779, 0
      %v2782 = vcombine.low %v2727, %v2735
      %v2784 = vunpack.c.l.s4 1983009808
      %v2785 = vunpack.c.0.s8 %v2784
      %v2786 = vlaneseq
      %v2787 = vshrl.u32 %v2786, 7
      %v2788 = vsub.s32 %v2785, %v2787
      %v2789 = vrot.slane %v2782, %v2788
      %v2790 = vcombine.low %v2731, %v2739
      %v2792 = vunpack.c.l.s4 1983009808
      %v2793 = vunpack.c.0.s8 %v2792
      %v2794 = vlaneseq
      %v2795 = vshrl.u32 %v2794, 7
      %v2796 = vsub.s32 %v2793, %v2795
      %v2797 = vrot.slane %v2790, %v2796
      %v2798 = vcombine.low %v2789, %v2797
      %v2799 = vcombine.high %v2789, %v2797
      %v2801 = vunpack.c.l.s4 1934713408
      %v2802 = vunpack.c.0.s8 %v2801
      %v2803 = vlaneseq
      %v2804 = vshrl.u32 %v2803, 7
      %v2805 = vsub.s32 %v2802, %v2804
      %v2806 = vrot.slane %v2798, %v2805
      %v2808 = vunpack.c.l.s4 1934713408
      %v2809 = vunpack.c.0.s8 %v2808
      %v2810 = vlaneseq
      %v2811 = vshrl.u32 %v2810, 7
      %v2812 = vsub.s32 %v2809, %v2811
      %v2813 = vrot.slane %v2799, %v2812
      %v2814 = vcombine.high %v2806, 0
      %v2815 = vcombine.high %v2813, 0
      %v2818 = vpack.i.b16 %v2806, %v2772
      %v2819 = vshrl.u32 %v2772, 16
      %v2820 = vshrl.u32 %v2806, 16
      %v2821 = vpack.i.b16 %v2820, %v2819
      %v2824 = vpack.i.b16 %v2814, %v2780
      %v2825 = vshrl.u32 %v2780, 16
      %v2826 = vshrl.u32 %v2814, 16
      %v2827 = vpack.i.b16 %v2826, %v2825
      %v2830 = vpack.i.b16 %v2813, %v2779
      %v2831 = vshrl.u32 %v2779, 16
      %v2832 = vshrl.u32 %v2813, 16
      %v2833 = vpack.i.b16 %v2832, %v2831
      %v2836 = vpack.i.b16 %v2815, %v2781
      %v2837 = vshrl.u32 %v2781, 16
      %v2838 = vshrl.u32 %v2815, 16
      %v2839 = vpack.i.b16 %v2838, %v2837
      %2840 = vrot.lane.b32.xlu0 %v2821, 8
      %v2841 = vpop.permute.xlu0 %2840
      %2842 = vrot.lane.b32.xlu0 %v2824, 16
      %v2843 = vpop.permute.xlu0 %2842
      %2844 = vrot.lane.b32.xlu0 %v2827, 24
      %v2845 = vpop.permute.xlu0 %2844
      %2846 = vrot.lane.b32.xlu0 %v2830, 32
      %v2847 = vpop.permute.xlu0 %2846
      %2848 = vrot.lane.b32.xlu0 %v2833, 40
      %v2849 = vpop.permute.xlu0 %2848
      %2850 = vrot.lane.b32.xlu0 %v2836, 48
      %v2851 = vpop.permute.xlu0 %2850
      %2852 = vrot.lane.b32.xlu0 %v2839, 56
      %v2853 = vpop.permute.xlu0 %2852
      %v2856 = vsel %vm562, %v2818, %v2841
      %v2858 = vsel %vm566, %v2856, %v2843
      %v2860 = vsel %vm569, %v2858, %v2845
      %v2862 = vsel %vm572, %v2860, %v2847
      %v2864 = vsel %vm575, %v2862, %v2849
      %v2866 = vsel %vm578, %v2864, %v2851
      %v2868 = vsel %vm581, %v2866, %v2853
      %2869 = vrot.lane.b32.xlu0 %v2587, 126
      %v2870 = vpop.permute.xlu0 %2869
      %2871 = vrot.lane.b32.xlu0 %v2588, 126
      %v2872 = vpop.permute.xlu0 %2871
      %2873 = vrot.lane.b32.xlu0 %v2589, 126
      %v2874 = vpop.permute.xlu0 %2873
      %2875 = vrot.lane.b32.xlu0 %v2590, 126
      %v2876 = vpop.permute.xlu0 %2875
      %2877 = vrot.lane.b32.xlu0 %v2591, 126
      %v2878 = vpop.permute.xlu0 %2877
      %2879 = vrot.lane.b32.xlu0 %v2592, 126
      %v2880 = vpop.permute.xlu0 %2879
      %2881 = vrot.lane.b32.xlu0 %v2593, 126
      %v2882 = vpop.permute.xlu0 %2881
      %2883 = vrot.lane.b32.xlu0 %v2594, 126
      %v2884 = vpop.permute.xlu0 %2883
      %v2893 = vcombine.low %v2870, %v2878
      %v2895 = vunpack.c.l.s4 1983009808
      %v2896 = vunpack.c.0.s8 %v2895
      %v2897 = vlaneseq
      %v2898 = vshrl.u32 %v2897, 7
      %v2899 = vsub.s32 %v2896, %v2898
      %v2900 = vrot.slane %v2893, %v2899
      %v2901 = vcombine.low %v2874, %v2882
      %v2903 = vunpack.c.l.s4 1983009808
      %v2904 = vunpack.c.0.s8 %v2903
      %v2905 = vlaneseq
      %v2906 = vshrl.u32 %v2905, 7
      %v2907 = vsub.s32 %v2904, %v2906
      %v2908 = vrot.slane %v2901, %v2907
      %v2909 = vcombine.low %v2900, %v2908
      %v2910 = vcombine.high %v2900, %v2908
      %v2912 = vunpack.c.l.s4 1934713408
      %v2913 = vunpack.c.0.s8 %v2912
      %v2914 = vlaneseq
      %v2915 = vshrl.u32 %v2914, 7
      %v2916 = vsub.s32 %v2913, %v2915
      %v2917 = vrot.slane %v2909, %v2916
      %v2919 = vunpack.c.l.s4 1934713408
      %v2920 = vunpack.c.0.s8 %v2919
      %v2921 = vlaneseq
      %v2922 = vshrl.u32 %v2921, 7
      %v2923 = vsub.s32 %v2920, %v2922
      %v2924 = vrot.slane %v2910, %v2923
      %v2925 = vcombine.high %v2917, 0
      %v2926 = vcombine.high %v2924, 0
      %v2927 = vcombine.low %v2872, %v2880
      %v2929 = vunpack.c.l.s4 1983009808
      %v2930 = vunpack.c.0.s8 %v2929
      %v2931 = vlaneseq
      %v2932 = vshrl.u32 %v2931, 7
      %v2933 = vsub.s32 %v2930, %v2932
      %v2934 = vrot.slane %v2927, %v2933
      %v2935 = vcombine.low %v2876, %v2884
      %v2937 = vunpack.c.l.s4 1983009808
      %v2938 = vunpack.c.0.s8 %v2937
      %v2939 = vlaneseq
      %v2940 = vshrl.u32 %v2939, 7
      %v2941 = vsub.s32 %v2938, %v2940
      %v2942 = vrot.slane %v2935, %v2941
      %v2943 = vcombine.low %v2934, %v2942
      %v2944 = vcombine.high %v2934, %v2942
      %v2946 = vunpack.c.l.s4 1934713408
      %v2947 = vunpack.c.0.s8 %v2946
      %v2948 = vlaneseq
      %v2949 = vshrl.u32 %v2948, 7
      %v2950 = vsub.s32 %v2947, %v2949
      %v2951 = vrot.slane %v2943, %v2950
      %v2953 = vunpack.c.l.s4 1934713408
      %v2954 = vunpack.c.0.s8 %v2953
      %v2955 = vlaneseq
      %v2956 = vshrl.u32 %v2955, 7
      %v2957 = vsub.s32 %v2954, %v2956
      %v2958 = vrot.slane %v2944, %v2957
      %v2959 = vcombine.high %v2951, 0
      %v2960 = vcombine.high %v2958, 0
      %v2963 = vpack.i.b16 %v2951, %v2917
      %v2964 = vshrl.u32 %v2917, 16
      %v2965 = vshrl.u32 %v2951, 16
      %v2966 = vpack.i.b16 %v2965, %v2964
      %v2969 = vpack.i.b16 %v2959, %v2925
      %v2970 = vshrl.u32 %v2925, 16
      %v2971 = vshrl.u32 %v2959, 16
      %v2972 = vpack.i.b16 %v2971, %v2970
      %v2975 = vpack.i.b16 %v2958, %v2924
      %v2976 = vshrl.u32 %v2924, 16
      %v2977 = vshrl.u32 %v2958, 16
      %v2978 = vpack.i.b16 %v2977, %v2976
      %v2981 = vpack.i.b16 %v2960, %v2926
      %v2982 = vshrl.u32 %v2926, 16
      %v2983 = vshrl.u32 %v2960, 16
      %v2984 = vpack.i.b16 %v2983, %v2982
      %2985 = vrot.lane.b32.xlu0 %v2966, 8
      %v2986 = vpop.permute.xlu0 %2985
      %2987 = vrot.lane.b32.xlu0 %v2969, 16
      %v2988 = vpop.permute.xlu0 %2987
      %2989 = vrot.lane.b32.xlu0 %v2972, 24
      %v2990 = vpop.permute.xlu0 %2989
      %2991 = vrot.lane.b32.xlu0 %v2975, 32
      %v2992 = vpop.permute.xlu0 %2991
      %2993 = vrot.lane.b32.xlu0 %v2978, 40
      %v2994 = vpop.permute.xlu0 %2993
      %2995 = vrot.lane.b32.xlu0 %v2981, 48
      %v2996 = vpop.permute.xlu0 %2995
      %2997 = vrot.lane.b32.xlu0 %v2984, 56
      %v2998 = vpop.permute.xlu0 %2997
      %v3001 = vsel %vm562, %v2963, %v2986
      %v3003 = vsel %vm566, %v3001, %v2988
      %v3005 = vsel %vm569, %v3003, %v2990
      %v3007 = vsel %vm572, %v3005, %v2992
      %v3009 = vsel %vm575, %v3007, %v2994
      %v3011 = vsel %vm578, %v3009, %v2996
      %v3013 = vsel %vm581, %v3011, %v2998
      %v3015 = vrot.slane %v1974, 4
      %v3017 = vrot.slane %v2296, 4
      %v3019 = vrot.slane %v2586, 4
      %v3021 = vrot.slane %v2868, 4
      %vm3022 = vcmask 1043456
      %v3024 = vsel %vm3022, %v1821, %v3015
      %v3027 = vsel %vm3022, %v2119, %v3017
      %v3030 = vsel %vm3022, %v2441, %v3019
      %v3033 = vsel %vm3022, %v2723, %v3021
      %v3035 = vld [vmem:[%s2] sm:$0xf]
      %v3036 = vld [vmem:[%s2 + $0x4] sm:$0xf]
      %v3039 = vunpack.c.l.b16 %v3035
      %v3040 = vunpack.c.l.b16 %v3036
      %v3041 = vpack.c.b16 %v3040, %v3039
      %vm3042 = vcmask 588800
      %v3044 = vsel %vm3042, %v3041, 0
      %v3046 = vsel %vm3022, %v3013, 0
      %3048 = vmatprep.subr.bf16.mxu0 0
      %3049 = vmatpush1.bf16.msra.mxu0 0
      %3050 = vmatprep.subr.bf16.mxu0 0
      %3051 = vmatpush1.bf16.msra.mxu0 0
      %3052 = vmatprep.subr.bf16.mxu0 0
      %3053 = vmatpush1.bf16.msra.mxu0 0
      %3054 = vmatprep.subr.bf16.mxu0 0
      %3055 = vmatpush1.bf16.msra.mxu0 %v3046
      %3056 = vmatprep.subr.bf16.mxu0 0
      %3057 = vmatpush1.bf16.msra.mxu0 %v3033
      %3058 = vmatprep.subr.bf16.mxu0 0
      %3059 = vmatpush1.bf16.msra.mxu0 %v3030
      %3060 = vmatprep.subr.bf16.mxu0 0
      %3061 = vmatpush1.bf16.msra.mxu0 %v3027
      %3062 = vmatprep.subr.bf16.mxu0 0
      %3063 = vmatpush1.bf16.msra.mxu0 %v3024
      %3064 = vmatprep.subr.bf16.mxu0 0
      %3065 = vmatpush2.bf16.msra.mxu0 0
      %3066 = vmatprep.subr.bf16.mxu0 0
      %3067 = vmatpush2.bf16.msra.mxu0 0
      %3068 = vmatprep.subr.bf16.mxu0 0
      %3069 = vmatpush2.bf16.msra.mxu0 0
      %3070 = vmatprep.subr.bf16.mxu0 0
      %3071 = vmatpush2.bf16.msra.mxu0 0
      %3072 = vmatprep.subr.bf16.mxu0 0
      %3073 = vmatpush2.bf16.msra.mxu0 0
      %3074 = vmatprep.subr.bf16.mxu0 0
      %3075 = vmatpush2.bf16.msra.mxu0 0
      %3076 = vmatprep.subr.bf16.mxu0 0
      %3077 = vmatpush2.bf16.msra.mxu0 0
      %3078 = vmatprep.subr.bf16.mxu0 0
      %3079 = vmatpush2.bf16.msra.mxu0 0
      %3080 = vmatprep.mubr.bf16.mxu0 0
      %3081 = vmatmul.mubr.bf16.gmra.mxu0 %v3044
      %v3082 = vpop.f32.mrf.mxu0
      %v3083 = vadd.f32 0.0, %v3082
      %v3084 = vpop.f32.mrf.mxu0
      %v3085 = vpop.f32.mrf.mxu0
      %v3086 = vadd.f32 0.0, %v3085
      %v3087 = vpop.f32.mrf.mxu0
      %3088 = vdwg.mxu0
      %v3089 = vpack.c.bf16 %v3086, %v3083
      %v3091 = vunpack.c.l.b16 %v3089
      %v3092 = vunpack.c.h.b16 %v3089
      %v3093 = vpack.c.b16 %v3091, %v3091
      %v3094 = vpack.c.b16 %v3092, %v3092
      %vm3097 = vcmask 519168
      %3098 = vst.msk [vmem:[%s205] sm:$0xf] %vm3097, %v3093
      %3099 = vst.msk [vmem:[%s205 + $0x4] sm:$0xf] %vm3097, %v3094
      %v3100 = vsel %vm1396, %v3083, 0.0
      %3101 = vadd.xlane.f32.xlu0 %v3100
      %v3102 = vpop.xlane.xlu0 %3101
      %v3103 = vsel %vm1396, %v3086, 0.0
      %3104 = vadd.xlane.f32.xlu0 %v3103
      %v3105 = vpop.xlane.xlu0 %3104
      %v3106 = vmul.f32 %v3083, %v3083
      %v3107 = vmul.f32 %v3086, %v3086
      %v3108 = vsel %vm1396, %v3106, 0.0
      %3109 = vadd.xlane.f32.xlu0 %v3108
      %v3110 = vpop.xlane.xlu0 %3109
      %v3111 = vsel %vm1396, %v3107, 0.0
      %3112 = vadd.xlane.f32.xlu0 %v3111
      %v3113 = vpop.xlane.xlu0 %3112
      %v3114 = vsel %vm1666, %v3102, %v3110
      %v3115 = vsel %vm1666, %v3105, %v3113
      %vm3116 = vcmask 15360
      %3117 = vst.msk [vmem:[%s210] sm:$0xff] %vm3116, %v3114
      %3118 = vst.msk [vmem:[%s210 + $0x8] sm:$0xff] %vm3116, %v3115
      %p3119 = scmp.lt.s32.totalorder %s16, 1
      %s3120 = scalar_select %p3119, %s16, 1
      %s3121 = smul.addr %s3120, 2
      %s3122 = smul.addr %s3121, 4
      %s3123 = scalar_lea.vmem %s3, %s3122
      %p3124 = scmp.lt.s32.totalorder %s16, 1
      %s3125 = scalar_select %p3124, %s16, 1
      %s3126 = smul.addr %s3125, 2
      %s3127 = smul.addr %s3126, 8
      %s3128 = scalar_lea.vmem %s4, %s3127
      // Predicated region
      $region33: #{_lambda_.1} parent=31 // pred_check
        %p3129 = pneg %p102
      $region34: #{_lambda_.1} parent=31 // pred_check_branch
        %3131 = sbr.rel (%p3129) target = $region36
      $region35: #{_lambda_.1} parent=31 // pred_region
        _
      $region36: #{_lambda_.1} parent=31 // pred_fallthru
        _
      // Predicated region
      $region37: #{_lambda_.1} parent=31 // pred_check
        %p3132 = pneg %p128
      $region38: #{_lambda_.1} parent=31 // pred_check_branch
        %3134 = sbr.rel (%p3132) target = $region40
      $region39: #{_lambda_.1} parent=31 // pred_region
        _
      $region40: #{_lambda_.1} parent=31 // pred_fallthru
        _
    $region32: #{_lambda_.1} parent=5 // pred_fallthru
      _
    %p3135 = scmp.le.s32.totalorder 2, %s11
    // Predicated region
    $region41: #{_lambda_.1} parent=5 // pred_check
      %p3136 = pneg %p3135
    $region42: #{_lambda_.1} parent=5 // pred_check_branch
      %3138 = sbr.rel (%p3136) target = $region44
    $region43: #{_lambda_.1} parent=5 // pred_region
      %s3139 = ssub.s32 %s11, 2
      // Predicated region
      $region45: #{_lambda_.1} parent=43 // pred_check
        %p3140 = pneg %p108
      $region46: #{_lambda_.1} parent=43 // pred_check_branch
        %3142 = sbr.rel (%p3140) target = $region48
      $region47: #{_lambda_.1} parent=43 // pred_region
        %p3143 = scmp.lt.s32.totalorder %s17, 1
        %s3144 = scalar_select %p3143, %s17, 1
        %s3145 = smul.addr %s3144, 2
        %s3146 = smul.addr %s3145, 4
        %s3147 = scalar_lea.vmem %s3, %s3146
      $region48: #{_lambda_.1} parent=43 // pred_fallthru
        _
      // Predicated region
      $region49: #{_lambda_.1} parent=43 // pred_check
        %p3148 = pneg %p134
      $region50: #{_lambda_.1} parent=43 // pred_check_branch
        %3150 = sbr.rel (%p3148) target = $region52
      $region51: #{_lambda_.1} parent=43 // pred_region
        %p3151 = scmp.lt.s32.totalorder %s17, 1
        %s3152 = scalar_select %p3151, %s17, 1
        %s3153 = smul.addr %s3152, 2
        %s3154 = smul.addr %s3153, 8
        %s3155 = scalar_lea.vmem %s4, %s3154
      $region52: #{_lambda_.1} parent=43 // pred_fallthru
        _
    $region44: #{_lambda_.1} parent=5 // pred_fallthru
      _
  $region6: #{_lambda_.1} parent=0 // loop_footer
    %s15 = sadd.s32 1, %s11
  $region7: #{_lambda_.1} parent=0 // loop_footer_branch
    %10 = sbr.rel target = $region3
  $region8: #{_lambda_.1} parent=0 // loop_exit
    _

</llo_original>
